<compile_context>
chip_gen: v7x
topology: tpu7x:2x2x1
jax: 0.10.0
libtpu: 0.0.40
codegen_flags: <defaults>
</compile_context>

<pallas_src>
import functools

import jax
import jax.numpy as jnp
from jax import lax
from jax.experimental import pallas as pl
from jax.experimental.pallas import tpu as pltpu


def _attn_prop_kernel(x_ref, src_ref,
                      wq_ref, bq_ref, wk_ref, bk_ref, wv_ref, bv_ref,
                      wm_ref, bm_ref, w1_ref, b1_ref, w2_ref, b2_ref,
                      o_ref, *, num_heads: int, head_dim: int):
    x = x_ref[0]                                   # [TN, D] f32
    s = src_ref[0]                                 # [M, D]  f32
    D = num_heads * head_dim

    x_bf = x.astype(jnp.bfloat16)
    s_bf = s.astype(jnp.bfloat16)

    # Fused Q/K/V projections (columns [h*hd:(h+1)*hd] belong to head h).
    # bf16 MXU inputs, f32 accumulation. The 1/sqrt(hd) score scale is folded
    # into q (after the bias, matching the reference) so it is applied once.
    inv_sqrt_d = 1.0 / (head_dim ** 0.5)
    q = (jnp.dot(x_bf, wq_ref[...], preferred_element_type=jnp.float32)
         + bq_ref[0]) * inv_sqrt_d
    k = jnp.dot(s_bf, wk_ref[...], preferred_element_type=jnp.float32) + bk_ref[0]
    v = jnp.dot(s_bf, wv_ref[...], preferred_element_type=jnp.float32) + bv_ref[0]

    # Per-head attention. Contract the last dim of q and k directly with
    # dot_general (no .T), keep softmax in f32, normalize via EUP reciprocal.
    head_outs = []
    for h in range(num_heads):
        lo = h * head_dim
        qh = q[:, lo:lo + head_dim].astype(jnp.bfloat16)   # [TN, hd]
        kh = k[:, lo:lo + head_dim].astype(jnp.bfloat16)   # [M, hd]
        vh = v[:, lo:lo + head_dim].astype(jnp.bfloat16)   # [M, hd]
        scores = lax.dot_general(qh, kh, (((1,), (1,)), ((), ())),
                                 preferred_element_type=jnp.float32)  # [TN, M]
        scores = scores - jnp.max(scores, axis=-1, keepdims=True)
        e = jnp.exp(scores)
        inv_denom = pl.reciprocal(jnp.sum(e, axis=-1, keepdims=True), approx=True)
        prob = (e * inv_denom).astype(jnp.bfloat16)
        head_outs.append(jnp.dot(prob, vh, preferred_element_type=jnp.float32))

    ctx = jnp.concatenate(head_outs, axis=-1)      # [TN, D] f32
    # Single full-K merge GEMM instead of num_heads skinny (K = head_dim) GEMMs.
    msg = (jnp.dot(ctx.astype(jnp.bfloat16), wm_ref[...],
                   preferred_element_type=jnp.float32) + bm_ref[0])

    # Outer MLP on concat([x, msg], axis=-1): split W1 into its x / msg halves
    # instead of materializing the concatenation.
    w1 = w1_ref[...]                               # [2D, 2D] bf16
    h1 = (jnp.dot(x_bf, w1[:D, :], preferred_element_type=jnp.float32)
          + jnp.dot(msg.astype(jnp.bfloat16), w1[D:, :],
                    preferred_element_type=jnp.float32)
          + b1_ref[0])
    h1 = jnp.maximum(h1, 0.0)                      # ReLU
    out = (jnp.dot(h1.astype(jnp.bfloat16), w2_ref[...],
                   preferred_element_type=jnp.float32) + b2_ref[0])
    o_ref[0] = out.astype(o_ref.dtype)


_PARAM_ORDER = ("wq", "bq", "wk", "bk", "wv", "bv",
                "wm", "bm", "w1", "b1", "w2", "b2")
_WEIGHT_NAMES = frozenset({"wq", "wk", "wv", "wm", "w1", "w2"})


def attentional_propagation(x, source, params, num_heads, *,
                            tile_n=256, vmem_limit_bytes=None):
    B, N, D = x.shape
    M = source.shape[1]
    assert D % num_heads == 0
    head_dim = D // num_heads

    # Query tile along N: keep it sublane-friendly; fall back to the full
    # sequence for short / non-divisible N (e.g. the small demo shapes).
    tn = min(tile_n, N)
    if N % tn != 0 or tn % 8 != 0:
        tn = N
    grid = (B, N // tn)

    # Weights cast to bf16 at the boundary (halves DMA bytes / VMEM footprint);
    # biases stay f32 since they are added to f32 accumulators.
    ops = [params[name].astype(jnp.bfloat16) if name in _WEIGHT_NAMES
           else params[name].astype(jnp.float32)
           for name in _PARAM_ORDER]

    def const_spec(shape):
        return pl.BlockSpec(shape, lambda b, n: (0,) * len(shape))

    kernel = functools.partial(_attn_prop_kernel,
                               num_heads=num_heads, head_dim=head_dim)

    return pl.pallas_call(
        kernel,
        out_shape=jax.ShapeDtypeStruct((B, N, D), jnp.float32),
        grid=grid,
        in_specs=[pl.BlockSpec((1, tn, D), lambda b, n: (b, n, 0)),
                  pl.BlockSpec((1, M, D), lambda b, n: (b, 0, 0))]
                 + [const_spec(w.shape) for w in ops],
        out_specs=pl.BlockSpec((1, tn, D), lambda b, n: (b, n, 0)),
        compiler_params=pltpu.CompilerParams(
            dimension_semantics=("parallel", "parallel"),
            vmem_limit_bytes=vmem_limit_bytes),
    )(x, source, *ops)


def reference_forward(x, source, p, num_heads, *, matmul_dtype=jnp.bfloat16):
    """Pure-JAX mirror of the PyTorch AttentionalPropagation forward.

    `matmul_dtype` mirrors the kernel's precision policy (bf16 matmul inputs,
    f32 accumulation). Pass jnp.float32 for the exact full-precision forward.
    """
    B, N, D = x.shape
    M = source.shape[1]
    hd = D // num_heads

    def mm(a, w):
        return jnp.dot(a.astype(matmul_dtype), w.astype(matmul_dtype),
                       preferred_element_type=jnp.float32)

    q = mm(x, p["wq"]) + p["bq"][0]
    k = mm(source, p["wk"]) + p["bk"][0]
    v = mm(source, p["wv"]) + p["bv"][0]
    qs = (q * (1.0 / hd ** 0.5)).astype(matmul_dtype).reshape(B, N, num_heads, hd)
    kh = k.astype(matmul_dtype).reshape(B, M, num_heads, hd)
    vh = v.astype(matmul_dtype).reshape(B, M, num_heads, hd)
    scores = jnp.einsum("bnhd,bmhd->bhnm", qs, kh,
                        preferred_element_type=jnp.float32)
    prob = jax.nn.softmax(scores, axis=-1)
    ctx = jnp.einsum("bhnm,bmhd->bnhd", prob.astype(matmul_dtype), vh,
                     preferred_element_type=jnp.float32).reshape(B, N, D)
    msg = mm(ctx, p["wm"]) + p["bm"][0]
    cat = jnp.concatenate([x, msg], axis=-1)
    h1 = jax.nn.relu(mm(cat, p["w1"]) + p["b1"][0])
    return mm(h1, p["w2"]) + p["b2"][0]


def init_params(key, feature_dim):
    D = feature_dim
    shapes = {
        "wq": (D, D), "bq": (1, D),
        "wk": (D, D), "bk": (1, D),
        "wv": (D, D), "bv": (1, D),
        "wm": (D, D), "bm": (1, D),
        "w1": (2 * D, 2 * D), "b1": (1, 2 * D),
        "w2": (2 * D, D), "b2": (1, D),
    }
    params = {}
    for i, (name, shape) in enumerate(sorted(shapes.items())):
        sub = jax.random.fold_in(key, i)
        scale = 1.0 / (shape[0] ** 0.5)
        params[name] = scale * jax.random.normal(sub, shape, dtype=jnp.float32)
    return params


if __name__ == "__main__":
    B, N, M = 2, 8, 12         # batch, query seq len, source seq len
    D, num_heads = 32, 4       # feature_dim, heads (head_dim = 8)

    key = jax.random.PRNGKey(0)
    kx, ks, kp = jax.random.split(key, 3)
    x = jax.random.normal(kx, (B, N, D), dtype=jnp.float32)
    source = jax.random.normal(ks, (B, M, D), dtype=jnp.float32)
    params = init_params(kp, D)

    out = jax.block_until_ready(
        attentional_propagation(x, source, params, num_heads))
    ref = jax.block_until_ready(
        reference_forward(x, source, params, num_heads))

    assert out.shape == (B, N, D)
    # Tolerance covers the approx-reciprocal softmax normalization and
    # bf16-input / f32-accumulate matmul policy shared with the reference.
    assert jnp.allclose(out, ref, rtol=2e-2, atol=2e-2), "mismatch vs reference"

    print("KERNEL_OK")
</pallas_src>

<mosaic_0001>
module attributes {stable_mosaic.version = 11 : i64} {
  func.func @_attn_prop_kernel(%arg0: i32, %arg1: i32, %arg2: memref<1x8x32xf32, #tpu.memory_space<vmem>>, %arg3: memref<1x12x32xf32, #tpu.memory_space<vmem>>, %arg4: memref<32x32xbf16, #tpu.memory_space<vmem>>, %arg5: memref<1x32xf32, #tpu.memory_space<vmem>>, %arg6: memref<32x32xbf16, #tpu.memory_space<vmem>>, %arg7: memref<1x32xf32, #tpu.memory_space<vmem>>, %arg8: memref<32x32xbf16, #tpu.memory_space<vmem>>, %arg9: memref<1x32xf32, #tpu.memory_space<vmem>>, %arg10: memref<32x32xbf16, #tpu.memory_space<vmem>>, %arg11: memref<1x32xf32, #tpu.memory_space<vmem>>, %arg12: memref<64x64xbf16, #tpu.memory_space<vmem>>, %arg13: memref<1x64xf32, #tpu.memory_space<vmem>>, %arg14: memref<64x32xbf16, #tpu.memory_space<vmem>>, %arg15: memref<1x32xf32, #tpu.memory_space<vmem>>, %arg16: memref<1x8x32xf32, #tpu.memory_space<vmem>>) attributes {dimension_semantics = [#tpu.dimension_semantics<parallel>, #tpu.dimension_semantics<parallel>], iteration_bounds = array<i64: 2, 1>, scalar_prefetch = 0 : i64, scratch_operands = 0 : i64, tpu.core_type = #tpu.core_type<tc>, window_params = [{transform_indices = @transform_0, window_bounds = array<i64: 1, 8, 32>}, {transform_indices = @transform_1, window_bounds = array<i64: 1, 12, 32>}, {pipeline_mode = #tpu.pipeline_mode<synchronous>, transform_indices = @transform_2, window_bounds = array<i64: 32, 32>}, {pipeline_mode = #tpu.pipeline_mode<synchronous>, transform_indices = @transform_3, window_bounds = array<i64: 1, 32>}, {pipeline_mode = #tpu.pipeline_mode<synchronous>, transform_indices = @transform_4, window_bounds = array<i64: 32, 32>}, {pipeline_mode = #tpu.pipeline_mode<synchronous>, transform_indices = @transform_5, window_bounds = array<i64: 1, 32>}, {pipeline_mode = #tpu.pipeline_mode<synchronous>, transform_indices = @transform_6, window_bounds = array<i64: 32, 32>}, {pipeline_mode = #tpu.pipeline_mode<synchronous>, transform_indices = @transform_7, window_bounds = array<i64: 1, 32>}, {pipeline_mode = #tpu.pipeline_mode<synchronous>, transform_indices = @transform_8, window_bounds = array<i64: 32, 32>}, {pipeline_mode = #tpu.pipeline_mode<synchronous>, transform_indices = @transform_9, window_bounds = array<i64: 1, 32>}, {pipeline_mode = #tpu.pipeline_mode<synchronous>, transform_indices = @transform_10, window_bounds = array<i64: 64, 64>}, {pipeline_mode = #tpu.pipeline_mode<synchronous>, transform_indices = @transform_11, window_bounds = array<i64: 1, 64>}, {pipeline_mode = #tpu.pipeline_mode<synchronous>, transform_indices = @transform_12, window_bounds = array<i64: 64, 32>}, {pipeline_mode = #tpu.pipeline_mode<synchronous>, transform_indices = @transform_13, window_bounds = array<i64: 1, 32>}, {transform_indices = @transform_14, window_bounds = array<i64: 1, 8, 32>}]} {
    %c0 = arith.constant 0 : index
    %c0_0 = arith.constant 0 : index
    %c0_1 = arith.constant 0 : index
    %0 = vector.load %arg2[%c0, %c0_0, %c0_1] : memref<1x8x32xf32, #tpu.memory_space<vmem>>, vector<1x8x32xf32>
    %1 = vector.shape_cast %0 : vector<1x8x32xf32> to vector<8x32xf32>
    %c0_2 = arith.constant 0 : index
    %c0_3 = arith.constant 0 : index
    %c0_4 = arith.constant 0 : index
    %2 = vector.load %arg3[%c0_2, %c0_3, %c0_4] : memref<1x12x32xf32, #tpu.memory_space<vmem>>, vector<1x12x32xf32>
    %3 = vector.shape_cast %2 : vector<1x12x32xf32> to vector<12x32xf32>
    %4 = arith.truncf %1 : vector<8x32xf32> to vector<8x32xbf16>
    %5 = arith.truncf %3 : vector<12x32xf32> to vector<12x32xbf16>
    %c0_5 = arith.constant 0 : index
    %c0_6 = arith.constant 0 : index
    %6 = vector.load %arg4[%c0_5, %c0_6] : memref<32x32xbf16, #tpu.memory_space<vmem>>, vector<32x32xbf16>
    %cst = arith.constant dense<0.000000e+00> : vector<8x32xf32>
    %7 = tpu.matmul %4, %6, %cst {dimension_numbers = #tpu.dot_dimension_numbers<[1], [0], [0], [1], [0, 0, 1, 1], [], []>} : vector<8x32xbf16>, vector<32x32xbf16>, vector<8x32xf32> -> vector<8x32xf32>
    %c0_7 = arith.constant 0 : index
    %c0_8 = arith.constant 0 : index
    %8 = vector.load %arg5[%c0_7, %c0_8] : memref<1x32xf32, #tpu.memory_space<vmem>>, vector<1x32xf32>
    %9 = vector.shape_cast %8 : vector<1x32xf32> to vector<32xf32>
    %10 = vector.shape_cast %9 : vector<32xf32> to vector<1x32xf32>
    %11 = vector.broadcast %10 : vector<1x32xf32> to vector<8x32xf32>
    %12 = arith.addf %7, %11 : vector<8x32xf32>
    %cst_9 = arith.constant 0.353553385 : f32
    %13 = vector.broadcast %cst_9 : f32 to vector<8x32xf32>
    %14 = arith.mulf %12, %13 : vector<8x32xf32>
    %c0_10 = arith.constant 0 : index
    %c0_11 = arith.constant 0 : index
    %15 = vector.load %arg6[%c0_10, %c0_11] : memref<32x32xbf16, #tpu.memory_space<vmem>>, vector<32x32xbf16>
    %cst_12 = arith.constant dense<0.000000e+00> : vector<12x32xf32>
    %16 = tpu.matmul %5, %15, %cst_12 {dimension_numbers = #tpu.dot_dimension_numbers<[1], [0], [0], [1], [0, 0, 1, 1], [], []>} : vector<12x32xbf16>, vector<32x32xbf16>, vector<12x32xf32> -> vector<12x32xf32>
    %c0_13 = arith.constant 0 : index
    %c0_14 = arith.constant 0 : index
    %17 = vector.load %arg7[%c0_13, %c0_14] : memref<1x32xf32, #tpu.memory_space<vmem>>, vector<1x32xf32>
    %18 = vector.shape_cast %17 : vector<1x32xf32> to vector<32xf32>
    %19 = vector.shape_cast %18 : vector<32xf32> to vector<1x32xf32>
    %20 = vector.broadcast %19 : vector<1x32xf32> to vector<12x32xf32>
    %21 = arith.addf %16, %20 : vector<12x32xf32>
    %c0_15 = arith.constant 0 : index
    %c0_16 = arith.constant 0 : index
    %22 = vector.load %arg8[%c0_15, %c0_16] : memref<32x32xbf16, #tpu.memory_space<vmem>>, vector<32x32xbf16>
    %cst_17 = arith.constant dense<0.000000e+00> : vector<12x32xf32>
    %23 = tpu.matmul %5, %22, %cst_17 {dimension_numbers = #tpu.dot_dimension_numbers<[1], [0], [0], [1], [0, 0, 1, 1], [], []>} : vector<12x32xbf16>, vector<32x32xbf16>, vector<12x32xf32> -> vector<12x32xf32>
    %c0_18 = arith.constant 0 : index
    %c0_19 = arith.constant 0 : index
    %24 = vector.load %arg9[%c0_18, %c0_19] : memref<1x32xf32, #tpu.memory_space<vmem>>, vector<1x32xf32>
    %25 = vector.shape_cast %24 : vector<1x32xf32> to vector<32xf32>
    %26 = vector.shape_cast %25 : vector<32xf32> to vector<1x32xf32>
    %27 = vector.broadcast %26 : vector<1x32xf32> to vector<12x32xf32>
    %28 = arith.addf %23, %27 : vector<12x32xf32>
    %29 = vector.extract_strided_slice %14 {offsets = [0, 0], sizes = [8, 8], strides = [1, 1]} : vector<8x32xf32> to vector<8x8xf32>
    %30 = arith.truncf %29 : vector<8x8xf32> to vector<8x8xbf16>
    %31 = vector.extract_strided_slice %21 {offsets = [0, 0], sizes = [12, 8], strides = [1, 1]} : vector<12x32xf32> to vector<12x8xf32>
    %32 = arith.truncf %31 : vector<12x8xf32> to vector<12x8xbf16>
    %33 = vector.extract_strided_slice %28 {offsets = [0, 0], sizes = [12, 8], strides = [1, 1]} : vector<12x32xf32> to vector<12x8xf32>
    %34 = arith.truncf %33 : vector<12x8xf32> to vector<12x8xbf16>
    %cst_20 = arith.constant dense<0.000000e+00> : vector<8x12xf32>
    %35 = tpu.matmul %30, %32, %cst_20 {dimension_numbers = #tpu.dot_dimension_numbers<[1], [1], [0], [0], [0, 0, 1, 0], [], []>} : vector<8x8xbf16>, vector<12x8xbf16>, vector<8x12xf32> -> vector<8x12xf32>
    %cst_21 = arith.constant dense<0xFF800000> : vector<8xf32>
    %36 = vector.multi_reduction <maximumf>, %35, %cst_21 [1] : vector<8x12xf32> to vector<8xf32>
    %37 = vector.shape_cast %36 : vector<8xf32> to vector<8x1xf32>
    %38 = vector.broadcast %37 : vector<8x1xf32> to vector<8x12xf32>
    %39 = arith.subf %35, %38 : vector<8x12xf32>
    %40 = math.exp %39 : vector<8x12xf32>
    %cst_22 = arith.constant dense<0.000000e+00> : vector<8xf32>
    %41 = vector.multi_reduction <add>, %40, %cst_22 [1] : vector<8x12xf32> to vector<8xf32>
    %42 = vector.shape_cast %41 : vector<8xf32> to vector<8x1xf32>
    %43 = tpu.reciprocal %42 {approx = true} : vector<8x1xf32> -> vector<8x1xf32>
    %44 = vector.broadcast %43 : vector<8x1xf32> to vector<8x12xf32>
    %45 = arith.mulf %40, %44 : vector<8x12xf32>
    %46 = arith.truncf %45 : vector<8x12xf32> to vector<8x12xbf16>
    %cst_23 = arith.constant dense<0.000000e+00> : vector<8x8xf32>
    %47 = tpu.matmul %46, %34, %cst_23 {dimension_numbers = #tpu.dot_dimension_numbers<[1], [0], [0], [1], [0, 0, 1, 1], [], []>} : vector<8x12xbf16>, vector<12x8xbf16>, vector<8x8xf32> -> vector<8x8xf32>
    %48 = vector.extract_strided_slice %14 {offsets = [0, 8], sizes = [8, 8], strides = [1, 1]} : vector<8x32xf32> to vector<8x8xf32>
    %49 = arith.truncf %48 : vector<8x8xf32> to vector<8x8xbf16>
    %50 = vector.extract_strided_slice %21 {offsets = [0, 8], sizes = [12, 8], strides = [1, 1]} : vector<12x32xf32> to vector<12x8xf32>
    %51 = arith.truncf %50 : vector<12x8xf32> to vector<12x8xbf16>
    %52 = vector.extract_strided_slice %28 {offsets = [0, 8], sizes = [12, 8], strides = [1, 1]} : vector<12x32xf32> to vector<12x8xf32>
    %53 = arith.truncf %52 : vector<12x8xf32> to vector<12x8xbf16>
    %cst_24 = arith.constant dense<0.000000e+00> : vector<8x12xf32>
    %54 = tpu.matmul %49, %51, %cst_24 {dimension_numbers = #tpu.dot_dimension_numbers<[1], [1], [0], [0], [0, 0, 1, 0], [], []>} : vector<8x8xbf16>, vector<12x8xbf16>, vector<8x12xf32> -> vector<8x12xf32>
    %cst_25 = arith.constant dense<0xFF800000> : vector<8xf32>
    %55 = vector.multi_reduction <maximumf>, %54, %cst_25 [1] : vector<8x12xf32> to vector<8xf32>
    %56 = vector.shape_cast %55 : vector<8xf32> to vector<8x1xf32>
    %57 = vector.broadcast %56 : vector<8x1xf32> to vector<8x12xf32>
    %58 = arith.subf %54, %57 : vector<8x12xf32>
    %59 = math.exp %58 : vector<8x12xf32>
    %cst_26 = arith.constant dense<0.000000e+00> : vector<8xf32>
    %60 = vector.multi_reduction <add>, %59, %cst_26 [1] : vector<8x12xf32> to vector<8xf32>
    %61 = vector.shape_cast %60 : vector<8xf32> to vector<8x1xf32>
    %62 = tpu.reciprocal %61 {approx = true} : vector<8x1xf32> -> vector<8x1xf32>
    %63 = vector.broadcast %62 : vector<8x1xf32> to vector<8x12xf32>
    %64 = arith.mulf %59, %63 : vector<8x12xf32>
    %65 = arith.truncf %64 : vector<8x12xf32> to vector<8x12xbf16>
    %cst_27 = arith.constant dense<0.000000e+00> : vector<8x8xf32>
    %66 = tpu.matmul %65, %53, %cst_27 {dimension_numbers = #tpu.dot_dimension_numbers<[1], [0], [0], [1], [0, 0, 1, 1], [], []>} : vector<8x12xbf16>, vector<12x8xbf16>, vector<8x8xf32> -> vector<8x8xf32>
    %67 = vector.extract_strided_slice %14 {offsets = [0, 16], sizes = [8, 8], strides = [1, 1]} : vector<8x32xf32> to vector<8x8xf32>
    %68 = arith.truncf %67 : vector<8x8xf32> to vector<8x8xbf16>
    %69 = vector.extract_strided_slice %21 {offsets = [0, 16], sizes = [12, 8], strides = [1, 1]} : vector<12x32xf32> to vector<12x8xf32>
    %70 = arith.truncf %69 : vector<12x8xf32> to vector<12x8xbf16>
    %71 = vector.extract_strided_slice %28 {offsets = [0, 16], sizes = [12, 8], strides = [1, 1]} : vector<12x32xf32> to vector<12x8xf32>
    %72 = arith.truncf %71 : vector<12x8xf32> to vector<12x8xbf16>
    %cst_28 = arith.constant dense<0.000000e+00> : vector<8x12xf32>
    %73 = tpu.matmul %68, %70, %cst_28 {dimension_numbers = #tpu.dot_dimension_numbers<[1], [1], [0], [0], [0, 0, 1, 0], [], []>} : vector<8x8xbf16>, vector<12x8xbf16>, vector<8x12xf32> -> vector<8x12xf32>
    %cst_29 = arith.constant dense<0xFF800000> : vector<8xf32>
    %74 = vector.multi_reduction <maximumf>, %73, %cst_29 [1] : vector<8x12xf32> to vector<8xf32>
    %75 = vector.shape_cast %74 : vector<8xf32> to vector<8x1xf32>
    %76 = vector.broadcast %75 : vector<8x1xf32> to vector<8x12xf32>
    %77 = arith.subf %73, %76 : vector<8x12xf32>
    %78 = math.exp %77 : vector<8x12xf32>
    %cst_30 = arith.constant dense<0.000000e+00> : vector<8xf32>
    %79 = vector.multi_reduction <add>, %78, %cst_30 [1] : vector<8x12xf32> to vector<8xf32>
    %80 = vector.shape_cast %79 : vector<8xf32> to vector<8x1xf32>
    %81 = tpu.reciprocal %80 {approx = true} : vector<8x1xf32> -> vector<8x1xf32>
    %82 = vector.broadcast %81 : vector<8x1xf32> to vector<8x12xf32>
    %83 = arith.mulf %78, %82 : vector<8x12xf32>
    %84 = arith.truncf %83 : vector<8x12xf32> to vector<8x12xbf16>
    %cst_31 = arith.constant dense<0.000000e+00> : vector<8x8xf32>
    %85 = tpu.matmul %84, %72, %cst_31 {dimension_numbers = #tpu.dot_dimension_numbers<[1], [0], [0], [1], [0, 0, 1, 1], [], []>} : vector<8x12xbf16>, vector<12x8xbf16>, vector<8x8xf32> -> vector<8x8xf32>
    %86 = vector.extract_strided_slice %14 {offsets = [0, 24], sizes = [8, 8], strides = [1, 1]} : vector<8x32xf32> to vector<8x8xf32>
    %87 = arith.truncf %86 : vector<8x8xf32> to vector<8x8xbf16>
    %88 = vector.extract_strided_slice %21 {offsets = [0, 24], sizes = [12, 8], strides = [1, 1]} : vector<12x32xf32> to vector<12x8xf32>
    %89 = arith.truncf %88 : vector<12x8xf32> to vector<12x8xbf16>
    %90 = vector.extract_strided_slice %28 {offsets = [0, 24], sizes = [12, 8], strides = [1, 1]} : vector<12x32xf32> to vector<12x8xf32>
    %91 = arith.truncf %90 : vector<12x8xf32> to vector<12x8xbf16>
    %cst_32 = arith.constant dense<0.000000e+00> : vector<8x12xf32>
    %92 = tpu.matmul %87, %89, %cst_32 {dimension_numbers = #tpu.dot_dimension_numbers<[1], [1], [0], [0], [0, 0, 1, 0], [], []>} : vector<8x8xbf16>, vector<12x8xbf16>, vector<8x12xf32> -> vector<8x12xf32>
    %cst_33 = arith.constant dense<0xFF800000> : vector<8xf32>
    %93 = vector.multi_reduction <maximumf>, %92, %cst_33 [1] : vector<8x12xf32> to vector<8xf32>
    %94 = vector.shape_cast %93 : vector<8xf32> to vector<8x1xf32>
    %95 = vector.broadcast %94 : vector<8x1xf32> to vector<8x12xf32>
    %96 = arith.subf %92, %95 : vector<8x12xf32>
    %97 = math.exp %96 : vector<8x12xf32>
    %cst_34 = arith.constant dense<0.000000e+00> : vector<8xf32>
    %98 = vector.multi_reduction <add>, %97, %cst_34 [1] : vector<8x12xf32> to vector<8xf32>
    %99 = vector.shape_cast %98 : vector<8xf32> to vector<8x1xf32>
    %100 = tpu.reciprocal %99 {approx = true} : vector<8x1xf32> -> vector<8x1xf32>
    %101 = vector.broadcast %100 : vector<8x1xf32> to vector<8x12xf32>
    %102 = arith.mulf %97, %101 : vector<8x12xf32>
    %103 = arith.truncf %102 : vector<8x12xf32> to vector<8x12xbf16>
    %cst_35 = arith.constant dense<0.000000e+00> : vector<8x8xf32>
    %104 = tpu.matmul %103, %91, %cst_35 {dimension_numbers = #tpu.dot_dimension_numbers<[1], [0], [0], [1], [0, 0, 1, 1], [], []>} : vector<8x12xbf16>, vector<12x8xbf16>, vector<8x8xf32> -> vector<8x8xf32>
    %105 = tpu.concatenate %47, %66, %85, %104 in 1 : vector<8x8xf32>, vector<8x8xf32>, vector<8x8xf32>, vector<8x8xf32> -> vector<8x32xf32>
    %106 = arith.truncf %105 : vector<8x32xf32> to vector<8x32xbf16>
    %c0_36 = arith.constant 0 : index
    %c0_37 = arith.constant 0 : index
    %107 = vector.load %arg10[%c0_36, %c0_37] : memref<32x32xbf16, #tpu.memory_space<vmem>>, vector<32x32xbf16>
    %cst_38 = arith.constant dense<0.000000e+00> : vector<8x32xf32>
    %108 = tpu.matmul %106, %107, %cst_38 {dimension_numbers = #tpu.dot_dimension_numbers<[1], [0], [0], [1], [0, 0, 1, 1], [], []>} : vector<8x32xbf16>, vector<32x32xbf16>, vector<8x32xf32> -> vector<8x32xf32>
    %c0_39 = arith.constant 0 : index
    %c0_40 = arith.constant 0 : index
    %109 = vector.load %arg11[%c0_39, %c0_40] : memref<1x32xf32, #tpu.memory_space<vmem>>, vector<1x32xf32>
    %110 = vector.shape_cast %109 : vector<1x32xf32> to vector<32xf32>
    %111 = vector.shape_cast %110 : vector<32xf32> to vector<1x32xf32>
    %112 = vector.broadcast %111 : vector<1x32xf32> to vector<8x32xf32>
    %113 = arith.addf %108, %112 : vector<8x32xf32>
    %c0_41 = arith.constant 0 : index
    %c0_42 = arith.constant 0 : index
    %114 = vector.load %arg12[%c0_41, %c0_42] : memref<64x64xbf16, #tpu.memory_space<vmem>>, vector<64x64xbf16>
    %115 = vector.extract_strided_slice %114 {offsets = [0, 0], sizes = [32, 64], strides = [1, 1]} : vector<64x64xbf16> to vector<32x64xbf16>
    %cst_43 = arith.constant dense<0.000000e+00> : vector<8x64xf32>
    %116 = tpu.matmul %4, %115, %cst_43 {dimension_numbers = #tpu.dot_dimension_numbers<[1], [0], [0], [1], [0, 0, 1, 1], [], []>} : vector<8x32xbf16>, vector<32x64xbf16>, vector<8x64xf32> -> vector<8x64xf32>
    %117 = arith.truncf %113 : vector<8x32xf32> to vector<8x32xbf16>
    %118 = vector.extract_strided_slice %114 {offsets = [32, 0], sizes = [32, 64], strides = [1, 1]} : vector<64x64xbf16> to vector<32x64xbf16>
    %cst_44 = arith.constant dense<0.000000e+00> : vector<8x64xf32>
    %119 = tpu.matmul %117, %118, %cst_44 {dimension_numbers = #tpu.dot_dimension_numbers<[1], [0], [0], [1], [0, 0, 1, 1], [], []>} : vector<8x32xbf16>, vector<32x64xbf16>, vector<8x64xf32> -> vector<8x64xf32>
    %120 = arith.addf %116, %119 : vector<8x64xf32>
    %c0_45 = arith.constant 0 : index
    %c0_46 = arith.constant 0 : index
    %121 = vector.load %arg13[%c0_45, %c0_46] : memref<1x64xf32, #tpu.memory_space<vmem>>, vector<1x64xf32>
    %122 = vector.shape_cast %121 : vector<1x64xf32> to vector<64xf32>
    %123 = vector.shape_cast %122 : vector<64xf32> to vector<1x64xf32>
    %124 = vector.broadcast %123 : vector<1x64xf32> to vector<8x64xf32>
    %125 = arith.addf %120, %124 : vector<8x64xf32>
    %cst_47 = arith.constant 0.000000e+00 : f32
    %126 = vector.broadcast %cst_47 : f32 to vector<8x64xf32>
    %127 = arith.maximumf %125, %126 : vector<8x64xf32>
    %128 = arith.truncf %127 : vector<8x64xf32> to vector<8x64xbf16>
    %c0_48 = arith.constant 0 : index
    %c0_49 = arith.constant 0 : index
    %129 = vector.load %arg14[%c0_48, %c0_49] : memref<64x32xbf16, #tpu.memory_space<vmem>>, vector<64x32xbf16>
    %cst_50 = arith.constant dense<0.000000e+00> : vector<8x32xf32>
    %130 = tpu.matmul %128, %129, %cst_50 {dimension_numbers = #tpu.dot_dimension_numbers<[1], [0], [0], [1], [0, 0, 1, 1], [], []>} : vector<8x64xbf16>, vector<64x32xbf16>, vector<8x32xf32> -> vector<8x32xf32>
    %c0_51 = arith.constant 0 : index
    %c0_52 = arith.constant 0 : index
    %131 = vector.load %arg15[%c0_51, %c0_52] : memref<1x32xf32, #tpu.memory_space<vmem>>, vector<1x32xf32>
    %132 = vector.shape_cast %131 : vector<1x32xf32> to vector<32xf32>
    %133 = vector.shape_cast %132 : vector<32xf32> to vector<1x32xf32>
    %134 = vector.broadcast %133 : vector<1x32xf32> to vector<8x32xf32>
    %135 = arith.addf %130, %134 : vector<8x32xf32>
    %c0_53 = arith.constant 0 : index
    %c0_54 = arith.constant 0 : index
    %c0_55 = arith.constant 0 : index
    %136 = vector.load %arg16[%c0_53, %c0_54, %c0_55] : memref<1x8x32xf32, #tpu.memory_space<vmem>>, vector<1x8x32xf32>
    %137 = vector.shape_cast %136 : vector<1x8x32xf32> to vector<8x32xf32>
    %138 = vector.shape_cast %135 : vector<8x32xf32> to vector<1x8x32xf32>
    tpu.vector_store %arg16[%c0_53, %c0_54, %c0_55], %138 {strides = array<i32>} : memref<1x8x32xf32, #tpu.memory_space<vmem>>, vector<1x8x32xf32>,
    return
  }
  func.func @transform_0(%arg0: i32, %arg1: i32) -> (i32, i32, i32) {
    %c0_i32 = arith.constant 0 : i32
    %c0_i32_0 = arith.constant 0 : i32
    return %arg0, %arg1, %c0_i32 : i32, i32, i32
  }
  func.func @transform_1(%arg0: i32, %arg1: i32) -> (i32, i32, i32) {
    %c0_i32 = arith.constant 0 : i32
    %c0_i32_0 = arith.constant 0 : i32
    %c0_i32_1 = arith.constant 0 : i32
    return %arg0, %c0_i32, %c0_i32_0 : i32, i32, i32
  }
  func.func @transform_2(%arg0: i32, %arg1: i32) -> (i32, i32) {
    %c0_i32 = arith.constant 0 : i32
    %c0_i32_0 = arith.constant 0 : i32
    %c0_i32_1 = arith.constant 0 : i32
    return %c0_i32, %c0_i32_0 : i32, i32
  }
  func.func @transform_3(%arg0: i32, %arg1: i32) -> (i32, i32) {
    %c0_i32 = arith.constant 0 : i32
    %c0_i32_0 = arith.constant 0 : i32
    %c0_i32_1 = arith.constant 0 : i32
    return %c0_i32, %c0_i32_0 : i32, i32
  }
  func.func @transform_4(%arg0: i32, %arg1: i32) -> (i32, i32) {
    %c0_i32 = arith.constant 0 : i32
    %c0_i32_0 = arith.constant 0 : i32
    %c0_i32_1 = arith.constant 0 : i32
    return %c0_i32, %c0_i32_0 : i32, i32
  }
  func.func @transform_5(%arg0: i32, %arg1: i32) -> (i32, i32) {
    %c0_i32 = arith.constant 0 : i32
    %c0_i32_0 = arith.constant 0 : i32
    %c0_i32_1 = arith.constant 0 : i32
    return %c0_i32, %c0_i32_0 : i32, i32
  }
  func.func @transform_6(%arg0: i32, %arg1: i32) -> (i32, i32) {
    %c0_i32 = arith.constant 0 : i32
    %c0_i32_0 = arith.constant 0 : i32
    %c0_i32_1 = arith.constant 0 : i32
    return %c0_i32, %c0_i32_0 : i32, i32
  }
  func.func @transform_7(%arg0: i32, %arg1: i32) -> (i32, i32) {
    %c0_i32 = arith.constant 0 : i32
    %c0_i32_0 = arith.constant 0 : i32
    %c0_i32_1 = arith.constant 0 : i32
    return %c0_i32, %c0_i32_0 : i32, i32
  }
  func.func @transform_8(%arg0: i32, %arg1: i32) -> (i32, i32) {
    %c0_i32 = arith.constant 0 : i32
    %c0_i32_0 = arith.constant 0 : i32
    %c0_i32_1 = arith.constant 0 : i32
    return %c0_i32, %c0_i32_0 : i32, i32
  }
  func.func @transform_9(%arg0: i32, %arg1: i32) -> (i32, i32) {
    %c0_i32 = arith.constant 0 : i32
    %c0_i32_0 = arith.constant 0 : i32
    %c0_i32_1 = arith.constant 0 : i32
    return %c0_i32, %c0_i32_0 : i32, i32
  }
  func.func @transform_10(%arg0: i32, %arg1: i32) -> (i32, i32) {
    %c0_i32 = arith.constant 0 : i32
    %c0_i32_0 = arith.constant 0 : i32
    %c0_i32_1 = arith.constant 0 : i32
    return %c0_i32, %c0_i32_0 : i32, i32
  }
  func.func @transform_11(%arg0: i32, %arg1: i32) -> (i32, i32) {
    %c0_i32 = arith.constant 0 : i32
    %c0_i32_0 = arith.constant 0 : i32
    %c0_i32_1 = arith.constant 0 : i32
    return %c0_i32, %c0_i32_0 : i32, i32
  }
  func.func @transform_12(%arg0: i32, %arg1: i32) -> (i32, i32) {
    %c0_i32 = arith.constant 0 : i32
    %c0_i32_0 = arith.constant 0 : i32
    %c0_i32_1 = arith.constant 0 : i32
    return %c0_i32, %c0_i32_0 : i32, i32
  }
  func.func @transform_13(%arg0: i32, %arg1: i32) -> (i32, i32) {
    %c0_i32 = arith.constant 0 : i32
    %c0_i32_0 = arith.constant 0 : i32
    %c0_i32_1 = arith.constant 0 : i32
    return %c0_i32, %c0_i32_0 : i32, i32
  }
  func.func @transform_14(%arg0: i32, %arg1: i32) -> (i32, i32, i32) {
    %c0_i32 = arith.constant 0 : i32
    %c0_i32_0 = arith.constant 0 : i32
    return %arg0, %arg1, %c0_i32 : i32, i32, i32
  }
}

</mosaic_0001>

<llo_original>
// kernel: tpu_custom_call.1
$region0: #{tpu_custom_call.1}
  #allocation0 [shape = 'u32[]', space=smem, size = 0x4, offset = 0x4, fixed_abs, tag = 'smem constant byte address 0x4 - core index']
  #allocation1 [shape = 'u32[144,128]{1,0:T(1,128)}', space=vmem, size = 0x12000, scoped, tag = 'internal scratch']
  %s0 = inlined_call_operand.vmem [shape: f32[2,8,32], index: 0, kind: input, shape index: {}]
  %s1 = inlined_call_operand.vmem [shape: f32[2,12,32], index: 1, kind: input, shape index: {}]
  %s2 = inlined_call_operand.vmem [shape: bf16[32,32], index: 2, kind: input, shape index: {}]
  %s3 = inlined_call_operand.vmem [shape: f32[1,32], index: 3, kind: input, shape index: {}]
  %s4 = inlined_call_operand.vmem [shape: bf16[32,32], index: 4, kind: input, shape index: {}]
  %s5 = inlined_call_operand.vmem [shape: f32[1,32], index: 5, kind: input, shape index: {}]
  %s6 = inlined_call_operand.vmem [shape: bf16[32,32], index: 6, kind: input, shape index: {}]
  %s7 = inlined_call_operand.hbm [shape: f32[1,32], index: 7, kind: input, shape index: {}]
  %s8 = inlined_call_operand.vmem [shape: bf16[32,32], index: 8, kind: input, shape index: {}]
  %s9 = inlined_call_operand.vmem [shape: f32[1,32], index: 9, kind: input, shape index: {}]
  %s10 = inlined_call_operand.vmem [shape: bf16[64,64], index: 10, kind: input, shape index: {}]
  %s11 = inlined_call_operand.vmem [shape: f32[1,64], index: 11, kind: input, shape index: {}]
  %s12 = inlined_call_operand.vmem [shape: bf16[64,32], index: 12, kind: input, shape index: {}]
  %s13 = inlined_call_operand.vmem [shape: f32[1,32], index: 13, kind: input, shape index: {}]
  %s14 = inlined_call_operand.hbm [shape: f32[2,8,32], index: 14, kind: output, shape index: {}]
  %s15 = sld [smem:[#allocation0]]
  $region93: #{tpu_custom_call.1} parent=0
    _
  %s17 = ssub.s32 1, %s15
  %s18 = scalar_select 0, %s17, %s15
  $region1: #{tpu_custom_call.1} parent=0
    #allocation2 [shape = 'u8[512]{0}', space=vmem, size = 0x400, scoped, tag = 'input window, operand 7, single buffered']
    #allocation3 [shape = 's32[2]{0}', space=sflag, size = 0x8, scoped, tag = 'scoped memory for tpu_custom_call.1']
    #allocation4 [shape = 's32[2]{0}', space=sflag, size = 0x8, scoped, tag = 'scoped memory for tpu_custom_call.1']
    #allocation5 [shape = 'u8[8192]{0}', space=vmem, size = 0x2000, scoped, tag = 'output window, operand 0']
    %19 = vsyncpa [#allocation3], 0
    %20 = vsyncpa [#allocation4], 0
    %s21 = scalar_lea.sflag [#allocation4], 1
    %22 = vsyncpa %s21, 0
    loop: start=0, step=1, limit=4
    $region2: #{tpu_custom_call.1} parent=1 // loop_pre_header
      _
    $region3: #{tpu_custom_call.1} parent=1 // loop_header
      %s24 = sphi 0, %s28
      %p25 = scmp.ge.s32.totalorder %s24, 4
      %s31 = sphi 0, %s43
      %s32 = sphi 0, %s39
      %s33 = sphi 0, %s31
      %s34 = sphi 0, %s32
      %s35 = sphi 0, %s33
      %s36 = sphi 0, %s34
      %s48 = sphi 0, %s50
      %s51 = sphi 0, %s48
      %s52 = sphi 0, %s51
      %s68 = sphi 0, %s52
      %s74 = sphi 0, %s76
      %s77 = sphi 0, %s74
      %s78 = sphi 0, %s77
      %s94 = sphi 0, %s78
      %s98 = sphi 0, %s98
      %s100 = sphi 0, %s98
      %s101 = sphi 0, %s100
      %s115 = sphi 0, %s101
      %s119 = sphi 0, %s119
      %s121 = sphi 0, %s119
      %s122 = sphi 0, %s121
      %s136 = sphi 0, %s122
      %s140 = sphi 0, %s140
      %s142 = sphi 0, %s140
      %s143 = sphi 0, %s142
      %s157 = sphi 0, %s143
      %s161 = sphi 0, %s161
      %s163 = sphi 0, %s161
      %s164 = sphi 0, %s163
      %s178 = sphi 0, %s164
      %s182 = sphi 0, %s182
      %s184 = sphi 0, %s182
      %s185 = sphi 0, %s184
      %s199 = sphi 0, %s185
      %s203 = sphi 0, %s203
      %s205 = sphi 0, %s203
      %s206 = sphi 0, %s205
      %s220 = sphi 0, %s206
      %s224 = sphi 0, %s224
      %s226 = sphi 0, %s224
      %s227 = sphi 0, %s226
      %s241 = sphi 0, %s227
      %s245 = sphi 0, %s245
      %s247 = sphi 0, %s245
      %s248 = sphi 0, %s247
      %s262 = sphi 0, %s248
      %s266 = sphi 0, %s266
      %s268 = sphi 0, %s266
      %s269 = sphi 0, %s268
      %s283 = sphi 0, %s269
      %s287 = sphi 0, %s287
      %s289 = sphi 0, %s287
      %s290 = sphi 0, %s289
      %s304 = sphi 0, %s290
      %s308 = sphi 0, %s308
      %s310 = sphi 0, %s308
      %s311 = sphi 0, %s310
      %s325 = sphi 0, %s311
      %s329 = sphi 0, %s329
      %s331 = sphi 0, %s329
      %s332 = sphi 0, %s331
      %s346 = sphi 0, %s332
      %s354 = sphi 0, %s356
      %s357 = sphi 0, %s354
      %s358 = sphi 0, %s357
      %s374 = sphi 0, %s358
    $region4: #{tpu_custom_call.1} parent=1 // loop_header_branch
      %27 = sbr.rel (%p25) target = $region8
    $region5: #{tpu_custom_call.1} parent=1 // loop_body
      %s29 = ssub.s32 %s24, 1
      %s30 = ssub.s32 %s24, 2
      %s37 = sadd.s32 1, %s32
      %p38 = scmp.ge.s32.totalorder %s37, 1
      %s39 = scalar_select %p38, 0, %s37
      %s40 = sadd.s32 1, %s31
      %s41 = scalar_select %p38, %s40, %s31
      %p42 = scmp.ge.s32.totalorder %s41, 2
      %s43 = scalar_select %p42, 0, %s41
      %s44 = ssub.s32 %s31, %s43
      %s45 = ssub.s32 %s32, %s39
      %s46 = sor.u32 %s44, %s45
      %p47 = scmp.eq.s32.totalorder %s46, 0
      %s49 = sadd.s32 %s48, 1
      %s50 = scalar_select %p47, %s48, %s49
      %p53 = pneg %p47
      %p54 = scmp.eq.s32.totalorder %s24, 1
      %p55 = por %p53, %p54
      %p56 = scmp.ne.s32.totalorder %s48, %s51
      %p57 = scmp.eq.s32.totalorder %s24, 0
      %p58 = por %p56, %p57
      %p59 = scmp.ne.s32.totalorder %s48, %s51
      %p60 = scmp.eq.s32.totalorder %s29, 1
      %p61 = por %p59, %p60
      %p62 = scmp.ne.s32.totalorder %s51, %s52
      %p63 = scmp.eq.s32.totalorder %s29, 0
      %p64 = por %p62, %p63
      %p65 = scmp.ne.s32.totalorder %s51, %s52
      %p66 = scmp.eq.s32.totalorder %s30, 1
      %p67 = por %p65, %p66
      %p69 = scmp.ne.s32.totalorder %s52, %s68
      %p70 = scmp.eq.s32.totalorder %s30, 0
      %p71 = por %p69, %p70
      %s72 = ssub.s32 %s31, %s43
      %p73 = scmp.eq.s32.totalorder %s72, 0
      %s75 = sadd.s32 %s74, 1
      %s76 = scalar_select %p73, %s74, %s75
      %p79 = pneg %p73
      %p80 = scmp.eq.s32.totalorder %s24, 1
      %p81 = por %p79, %p80
      %p82 = scmp.ne.s32.totalorder %s74, %s77
      %p83 = scmp.eq.s32.totalorder %s24, 0
      %p84 = por %p82, %p83
      %p85 = scmp.ne.s32.totalorder %s74, %s77
      %p86 = scmp.eq.s32.totalorder %s29, 1
      %p87 = por %p85, %p86
      %p88 = scmp.ne.s32.totalorder %s77, %s78
      %p89 = scmp.eq.s32.totalorder %s29, 0
      %p90 = por %p88, %p89
      %p91 = scmp.ne.s32.totalorder %s77, %s78
      %p92 = scmp.eq.s32.totalorder %s30, 1
      %p93 = por %p91, %p92
      %p95 = scmp.ne.s32.totalorder %s78, %s94
      %p96 = scmp.eq.s32.totalorder %s30, 0
      %p97 = por %p95, %p96
      %s99 = sadd.s32 %s98, 1
      %p102 = scmp.eq.s32.totalorder %s24, 1
      %p103 = scmp.ne.s32.totalorder %s98, %s100
      %p104 = scmp.eq.s32.totalorder %s24, 0
      %p105 = por %p103, %p104
      %p106 = scmp.ne.s32.totalorder %s98, %s100
      %p107 = scmp.eq.s32.totalorder %s29, 1
      %p108 = por %p106, %p107
      %p109 = scmp.ne.s32.totalorder %s100, %s101
      %p110 = scmp.eq.s32.totalorder %s29, 0
      %p111 = por %p109, %p110
      %p112 = scmp.ne.s32.totalorder %s100, %s101
      %p113 = scmp.eq.s32.totalorder %s30, 1
      %p114 = por %p112, %p113
      %p116 = scmp.ne.s32.totalorder %s101, %s115
      %p117 = scmp.eq.s32.totalorder %s30, 0
      %p118 = por %p116, %p117
      %s120 = sadd.s32 %s119, 1
      %p123 = scmp.eq.s32.totalorder %s24, 1
      %p124 = scmp.ne.s32.totalorder %s119, %s121
      %p125 = scmp.eq.s32.totalorder %s24, 0
      %p126 = por %p124, %p125
      %p127 = scmp.ne.s32.totalorder %s119, %s121
      %p128 = scmp.eq.s32.totalorder %s29, 1
      %p129 = por %p127, %p128
      %p130 = scmp.ne.s32.totalorder %s121, %s122
      %p131 = scmp.eq.s32.totalorder %s29, 0
      %p132 = por %p130, %p131
      %p133 = scmp.ne.s32.totalorder %s121, %s122
      %p134 = scmp.eq.s32.totalorder %s30, 1
      %p135 = por %p133, %p134
      %p137 = scmp.ne.s32.totalorder %s122, %s136
      %p138 = scmp.eq.s32.totalorder %s30, 0
      %p139 = por %p137, %p138
      %s141 = sadd.s32 %s140, 1
      %p144 = scmp.eq.s32.totalorder %s24, 1
      %p145 = scmp.ne.s32.totalorder %s140, %s142
      %p146 = scmp.eq.s32.totalorder %s24, 0
      %p147 = por %p145, %p146
      %p148 = scmp.ne.s32.totalorder %s140, %s142
      %p149 = scmp.eq.s32.totalorder %s29, 1
      %p150 = por %p148, %p149
      %p151 = scmp.ne.s32.totalorder %s142, %s143
      %p152 = scmp.eq.s32.totalorder %s29, 0
      %p153 = por %p151, %p152
      %p154 = scmp.ne.s32.totalorder %s142, %s143
      %p155 = scmp.eq.s32.totalorder %s30, 1
      %p156 = por %p154, %p155
      %p158 = scmp.ne.s32.totalorder %s143, %s157
      %p159 = scmp.eq.s32.totalorder %s30, 0
      %p160 = por %p158, %p159
      %s162 = sadd.s32 %s161, 1
      %p165 = scmp.eq.s32.totalorder %s24, 1
      %p166 = scmp.ne.s32.totalorder %s161, %s163
      %p167 = scmp.eq.s32.totalorder %s24, 0
      %p168 = por %p166, %p167
      %p169 = scmp.ne.s32.totalorder %s161, %s163
      %p170 = scmp.eq.s32.totalorder %s29, 1
      %p171 = por %p169, %p170
      %p172 = scmp.ne.s32.totalorder %s163, %s164
      %p173 = scmp.eq.s32.totalorder %s29, 0
      %p174 = por %p172, %p173
      %p175 = scmp.ne.s32.totalorder %s163, %s164
      %p176 = scmp.eq.s32.totalorder %s30, 1
      %p177 = por %p175, %p176
      %p179 = scmp.ne.s32.totalorder %s164, %s178
      %p180 = scmp.eq.s32.totalorder %s30, 0
      %p181 = por %p179, %p180
      %s183 = sadd.s32 %s182, 1
      %p186 = scmp.eq.s32.totalorder %s24, 1
      %p187 = scmp.ne.s32.totalorder %s182, %s184
      %p188 = scmp.eq.s32.totalorder %s24, 0
      %p189 = por %p187, %p188
      %p190 = scmp.ne.s32.totalorder %s182, %s184
      %p191 = scmp.eq.s32.totalorder %s29, 1
      %p192 = por %p190, %p191
      %p193 = scmp.ne.s32.totalorder %s184, %s185
      %p194 = scmp.eq.s32.totalorder %s29, 0
      %p195 = por %p193, %p194
      %p196 = scmp.ne.s32.totalorder %s184, %s185
      %p197 = scmp.eq.s32.totalorder %s30, 1
      %p198 = por %p196, %p197
      %p200 = scmp.ne.s32.totalorder %s185, %s199
      %p201 = scmp.eq.s32.totalorder %s30, 0
      %p202 = por %p200, %p201
      %s204 = sadd.s32 %s203, 1
      %p207 = scmp.eq.s32.totalorder %s24, 1
      %p208 = scmp.ne.s32.totalorder %s203, %s205
      %p209 = scmp.eq.s32.totalorder %s24, 0
      %p210 = por %p208, %p209
      %p211 = scmp.ne.s32.totalorder %s203, %s205
      %p212 = scmp.eq.s32.totalorder %s29, 1
      %p213 = por %p211, %p212
      %p214 = scmp.ne.s32.totalorder %s205, %s206
      %p215 = scmp.eq.s32.totalorder %s29, 0
      %p216 = por %p214, %p215
      %p217 = scmp.ne.s32.totalorder %s205, %s206
      %p218 = scmp.eq.s32.totalorder %s30, 1
      %p219 = por %p217, %p218
      %p221 = scmp.ne.s32.totalorder %s206, %s220
      %p222 = scmp.eq.s32.totalorder %s30, 0
      %p223 = por %p221, %p222
      %s225 = sadd.s32 %s224, 1
      %p228 = scmp.eq.s32.totalorder %s24, 1
      %p229 = scmp.ne.s32.totalorder %s224, %s226
      %p230 = scmp.eq.s32.totalorder %s24, 0
      %p231 = por %p229, %p230
      %p232 = scmp.ne.s32.totalorder %s224, %s226
      %p233 = scmp.eq.s32.totalorder %s29, 1
      %p234 = por %p232, %p233
      %p235 = scmp.ne.s32.totalorder %s226, %s227
      %p236 = scmp.eq.s32.totalorder %s29, 0
      %p237 = por %p235, %p236
      %p238 = scmp.ne.s32.totalorder %s226, %s227
      %p239 = scmp.eq.s32.totalorder %s30, 1
      %p240 = por %p238, %p239
      %p242 = scmp.ne.s32.totalorder %s227, %s241
      %p243 = scmp.eq.s32.totalorder %s30, 0
      %p244 = por %p242, %p243
      %s246 = sadd.s32 %s245, 1
      %p249 = scmp.eq.s32.totalorder %s24, 1
      %p250 = scmp.ne.s32.totalorder %s245, %s247
      %p251 = scmp.eq.s32.totalorder %s24, 0
      %p252 = por %p250, %p251
      %p253 = scmp.ne.s32.totalorder %s245, %s247
      %p254 = scmp.eq.s32.totalorder %s29, 1
      %p255 = por %p253, %p254
      %p256 = scmp.ne.s32.totalorder %s247, %s248
      %p257 = scmp.eq.s32.totalorder %s29, 0
      %p258 = por %p256, %p257
      %p259 = scmp.ne.s32.totalorder %s247, %s248
      %p260 = scmp.eq.s32.totalorder %s30, 1
      %p261 = por %p259, %p260
      %p263 = scmp.ne.s32.totalorder %s248, %s262
      %p264 = scmp.eq.s32.totalorder %s30, 0
      %p265 = por %p263, %p264
      %s267 = sadd.s32 %s266, 1
      %p270 = scmp.eq.s32.totalorder %s24, 1
      %p271 = scmp.ne.s32.totalorder %s266, %s268
      %p272 = scmp.eq.s32.totalorder %s24, 0
      %p273 = por %p271, %p272
      %p274 = scmp.ne.s32.totalorder %s266, %s268
      %p275 = scmp.eq.s32.totalorder %s29, 1
      %p276 = por %p274, %p275
      %p277 = scmp.ne.s32.totalorder %s268, %s269
      %p278 = scmp.eq.s32.totalorder %s29, 0
      %p279 = por %p277, %p278
      %p280 = scmp.ne.s32.totalorder %s268, %s269
      %p281 = scmp.eq.s32.totalorder %s30, 1
      %p282 = por %p280, %p281
      %p284 = scmp.ne.s32.totalorder %s269, %s283
      %p285 = scmp.eq.s32.totalorder %s30, 0
      %p286 = por %p284, %p285
      %s288 = sadd.s32 %s287, 1
      %p291 = scmp.eq.s32.totalorder %s24, 1
      %p292 = scmp.ne.s32.totalorder %s287, %s289
      %p293 = scmp.eq.s32.totalorder %s24, 0
      %p294 = por %p292, %p293
      %p295 = scmp.ne.s32.totalorder %s287, %s289
      %p296 = scmp.eq.s32.totalorder %s29, 1
      %p297 = por %p295, %p296
      %p298 = scmp.ne.s32.totalorder %s289, %s290
      %p299 = scmp.eq.s32.totalorder %s29, 0
      %p300 = por %p298, %p299
      %p301 = scmp.ne.s32.totalorder %s289, %s290
      %p302 = scmp.eq.s32.totalorder %s30, 1
      %p303 = por %p301, %p302
      %p305 = scmp.ne.s32.totalorder %s290, %s304
      %p306 = scmp.eq.s32.totalorder %s30, 0
      %p307 = por %p305, %p306
      %s309 = sadd.s32 %s308, 1
      %p312 = scmp.eq.s32.totalorder %s24, 1
      %p313 = scmp.ne.s32.totalorder %s308, %s310
      %p314 = scmp.eq.s32.totalorder %s24, 0
      %p315 = por %p313, %p314
      %p316 = scmp.ne.s32.totalorder %s308, %s310
      %p317 = scmp.eq.s32.totalorder %s29, 1
      %p318 = por %p316, %p317
      %p319 = scmp.ne.s32.totalorder %s310, %s311
      %p320 = scmp.eq.s32.totalorder %s29, 0
      %p321 = por %p319, %p320
      %p322 = scmp.ne.s32.totalorder %s310, %s311
      %p323 = scmp.eq.s32.totalorder %s30, 1
      %p324 = por %p322, %p323
      %p326 = scmp.ne.s32.totalorder %s311, %s325
      %p327 = scmp.eq.s32.totalorder %s30, 0
      %p328 = por %p326, %p327
      %s330 = sadd.s32 %s329, 1
      %p333 = scmp.eq.s32.totalorder %s24, 1
      %p334 = scmp.ne.s32.totalorder %s329, %s331
      %p335 = scmp.eq.s32.totalorder %s24, 0
      %p336 = por %p334, %p335
      %p337 = scmp.ne.s32.totalorder %s329, %s331
      %p338 = scmp.eq.s32.totalorder %s29, 1
      %p339 = por %p337, %p338
      %p340 = scmp.ne.s32.totalorder %s331, %s332
      %p341 = scmp.eq.s32.totalorder %s29, 0
      %p342 = por %p340, %p341
      %p343 = scmp.ne.s32.totalorder %s331, %s332
      %p344 = scmp.eq.s32.totalorder %s30, 1
      %p345 = por %p343, %p344
      %p347 = scmp.ne.s32.totalorder %s332, %s346
      %p348 = scmp.eq.s32.totalorder %s30, 0
      %p349 = por %p347, %p348
      %s350 = ssub.s32 %s31, %s43
      %s351 = ssub.s32 %s32, %s39
      %s352 = sor.u32 %s350, %s351
      %p353 = scmp.eq.s32.totalorder %s352, 0
      %s355 = sadd.s32 %s354, 1
      %s356 = scalar_select %p353, %s354, %s355
      %p359 = pneg %p353
      %p360 = scmp.eq.s32.totalorder %s24, 1
      %p361 = por %p359, %p360
      %p362 = scmp.ne.s32.totalorder %s354, %s357
      %p363 = scmp.eq.s32.totalorder %s24, 0
      %p364 = por %p362, %p363
      %p365 = scmp.ne.s32.totalorder %s354, %s357
      %p366 = scmp.eq.s32.totalorder %s29, 1
      %p367 = por %p365, %p366
      %p368 = scmp.ne.s32.totalorder %s357, %s358
      %p369 = scmp.eq.s32.totalorder %s29, 0
      %p370 = por %p368, %p369
      %p371 = scmp.ne.s32.totalorder %s357, %s358
      %p372 = scmp.eq.s32.totalorder %s30, 1
      %p373 = por %p371, %p372
      %p375 = scmp.ne.s32.totalorder %s358, %s374
      %p376 = scmp.eq.s32.totalorder %s30, 0
      %p377 = por %p375, %p376
      %p378 = scmp.le.s32.totalorder 1, %s24
      %p379 = scmp.lt.s32.totalorder %s24, 3
      %p380 = pnand %p378, %p379
      %p381 = pneg %p380
      // Predicated region
      $region9: #{tpu_custom_call.1} parent=5 // pred_check
        _
      $region10: #{tpu_custom_call.1} parent=5 // pred_check_branch
        %383 = sbr.rel (%p380) target = $region12
      $region11: #{tpu_custom_call.1} parent=5 // pred_region
        %s384 = ssub.s32 %s24, 1
        // Predicated region
        $region13: #{tpu_custom_call.1} parent=11 // pred_check
          %p385 = pneg %p111
        $region14: #{tpu_custom_call.1} parent=11 // pred_check_branch
          %387 = sbr.rel (%p385) target = $region16
        $region15: #{tpu_custom_call.1} parent=11 // pred_region
          _
        $region16: #{tpu_custom_call.1} parent=11 // pred_fallthru
          _
        // Predicated region
        $region17: #{tpu_custom_call.1} parent=11 // pred_check
          %p388 = pneg %p132
        $region18: #{tpu_custom_call.1} parent=11 // pred_check_branch
          %390 = sbr.rel (%p388) target = $region20
        $region19: #{tpu_custom_call.1} parent=11 // pred_region
          _
        $region20: #{tpu_custom_call.1} parent=11 // pred_fallthru
          _
        // Predicated region
        $region21: #{tpu_custom_call.1} parent=11 // pred_check
          %p391 = pneg %p153
        $region22: #{tpu_custom_call.1} parent=11 // pred_check_branch
          %393 = sbr.rel (%p391) target = $region24
        $region23: #{tpu_custom_call.1} parent=11 // pred_region
          _
        $region24: #{tpu_custom_call.1} parent=11 // pred_fallthru
          _
        // Predicated region
        $region25: #{tpu_custom_call.1} parent=11 // pred_check
          %p394 = pneg %p174
        $region26: #{tpu_custom_call.1} parent=11 // pred_check_branch
          %396 = sbr.rel (%p394) target = $region28
        $region27: #{tpu_custom_call.1} parent=11 // pred_region
          _
        $region28: #{tpu_custom_call.1} parent=11 // pred_fallthru
          _
        // Predicated region
        $region29: #{tpu_custom_call.1} parent=11 // pred_check
          %p397 = pneg %p195
        $region30: #{tpu_custom_call.1} parent=11 // pred_check_branch
          %399 = sbr.rel (%p397) target = $region32
        $region31: #{tpu_custom_call.1} parent=11 // pred_region
          _
        $region32: #{tpu_custom_call.1} parent=11 // pred_fallthru
          _
        // Predicated region
        $region33: #{tpu_custom_call.1} parent=11 // pred_check
          %p400 = pneg %p216
        $region34: #{tpu_custom_call.1} parent=11 // pred_check_branch
          %402 = sbr.rel (%p400) target = $region36
        $region35: #{tpu_custom_call.1} parent=11 // pred_region
          %s404 = ssub.s32 16, 16
          %405 = vsyncadd [#allocation3], %s404
          %s407 = sshll.u32 [#allocation2], 4
          %s408 = int_to_ptr.vmem [resolvable:$true] %s407
          %410 = dma.hbm_to_vmem [thread:$0]  %s7, 16, %s408, [#allocation3]
        $region36: #{tpu_custom_call.1} parent=11 // pred_fallthru
          _
        // Predicated region
        $region37: #{tpu_custom_call.1} parent=11 // pred_check
          %p411 = pneg %p237
        $region38: #{tpu_custom_call.1} parent=11 // pred_check_branch
          %413 = sbr.rel (%p411) target = $region40
        $region39: #{tpu_custom_call.1} parent=11 // pred_region
          _
        $region40: #{tpu_custom_call.1} parent=11 // pred_fallthru
          _
        // Predicated region
        $region41: #{tpu_custom_call.1} parent=11 // pred_check
          %p414 = pneg %p258
        $region42: #{tpu_custom_call.1} parent=11 // pred_check_branch
          %416 = sbr.rel (%p414) target = $region44
        $region43: #{tpu_custom_call.1} parent=11 // pred_region
          _
        $region44: #{tpu_custom_call.1} parent=11 // pred_fallthru
          _
        // Predicated region
        $region45: #{tpu_custom_call.1} parent=11 // pred_check
          %p417 = pneg %p279
        $region46: #{tpu_custom_call.1} parent=11 // pred_check_branch
          %419 = sbr.rel (%p417) target = $region48
        $region47: #{tpu_custom_call.1} parent=11 // pred_region
          _
        $region48: #{tpu_custom_call.1} parent=11 // pred_fallthru
          _
        // Predicated region
        $region49: #{tpu_custom_call.1} parent=11 // pred_check
          %p420 = pneg %p300
        $region50: #{tpu_custom_call.1} parent=11 // pred_check_branch
          %422 = sbr.rel (%p420) target = $region52
        $region51: #{tpu_custom_call.1} parent=11 // pred_region
          _
        $region52: #{tpu_custom_call.1} parent=11 // pred_fallthru
          _
        // Predicated region
        $region53: #{tpu_custom_call.1} parent=11 // pred_check
          %p423 = pneg %p321
        $region54: #{tpu_custom_call.1} parent=11 // pred_check_branch
          %425 = sbr.rel (%p423) target = $region56
        $region55: #{tpu_custom_call.1} parent=11 // pred_region
          _
        $region56: #{tpu_custom_call.1} parent=11 // pred_fallthru
          _
        // Predicated region
        $region57: #{tpu_custom_call.1} parent=11 // pred_check
          %p426 = pneg %p342
        $region58: #{tpu_custom_call.1} parent=11 // pred_check_branch
          %428 = sbr.rel (%p426) target = $region60
        $region59: #{tpu_custom_call.1} parent=11 // pred_region
          _
        $region60: #{tpu_custom_call.1} parent=11 // pred_fallthru
          _
      $region12: #{tpu_custom_call.1} parent=5 // pred_fallthru
        _
      %p429 = scmp.lt.s32.totalorder %s24, 2
      // Predicated region
      $region61: #{tpu_custom_call.1} parent=5 // pred_check
        %p430 = pneg %p429
      $region62: #{tpu_custom_call.1} parent=5 // pred_check_branch
        %432 = sbr.rel (%p430) target = $region64
      $region63: #{tpu_custom_call.1} parent=5 // pred_region
        // Predicated region
        $region65: #{tpu_custom_call.1} parent=63 // pred_check
          %p433 = pneg %p58
        $region66: #{tpu_custom_call.1} parent=63 // pred_check_branch
          %435 = sbr.rel (%p433) target = $region68
        $region67: #{tpu_custom_call.1} parent=63 // pred_region
          %p436 = scmp.lt.s32.totalorder %s31, 1
          %s437 = scalar_select %p436, %s31, 1
          %p438 = scmp.lt.s32.totalorder %s32, 0
          %s439 = scalar_select %p438, %s32, 0
          %s440 = sadd.s32 %s439, %s437
          %s441 = smul.addr %s440, 8
          %s442 = scalar_lea.vmem %s0, %s441
        $region68: #{tpu_custom_call.1} parent=63 // pred_fallthru
          _
        // Predicated region
        $region69: #{tpu_custom_call.1} parent=63 // pred_check
          %p443 = pneg %p84
        $region70: #{tpu_custom_call.1} parent=63 // pred_check_branch
          %445 = sbr.rel (%p443) target = $region72
        $region71: #{tpu_custom_call.1} parent=63 // pred_region
          %p446 = scmp.lt.s32.totalorder %s31, 1
          %s447 = scalar_select %p446, %s31, 1
          %s448 = smul.addr %s447, 2
          %s449 = smul.addr %s448, 8
          %s450 = scalar_lea.vmem %s1, %s449
        $region72: #{tpu_custom_call.1} parent=63 // pred_fallthru
          _
      $region64: #{tpu_custom_call.1} parent=5 // pred_fallthru
        _
      %p451 = scmp.le.s32.totalorder 1, %s24
      %p452 = scmp.lt.s32.totalorder %s24, 3
      %p453 = pnand %p451, %p452
      %p454 = pneg %p453
      // Predicated region
      $region73: #{tpu_custom_call.1} parent=5 // pred_check
        _
      $region74: #{tpu_custom_call.1} parent=5 // pred_check_branch
        %456 = sbr.rel (%p453) target = $region76
      $region75: #{tpu_custom_call.1} parent=5 // pred_region
        %s457 = ssub.s32 %s24, 1
        // Predicated region
        $region77: #{tpu_custom_call.1} parent=75 // pred_check
          %p458 = pneg %p216
        $region78: #{tpu_custom_call.1} parent=75 // pred_check_branch
          %460 = sbr.rel (%p458) target = $region80
        $region79: #{tpu_custom_call.1} parent=75 // pred_region
          %461 = dma.done [#allocation3], 16
        $region80: #{tpu_custom_call.1} parent=75 // pred_fallthru
          _
        %p462 = scmp.lt.s32.totalorder %s33, 1
        %s463 = scalar_select %p462, %s33, 1
        %p464 = scmp.lt.s32.totalorder %s34, 0
        %s465 = scalar_select %p464, %s34, 0
        %s466 = sadd.s32 %s465, %s463
        %s467 = smul.addr %s466, 8
        %s468 = scalar_lea.vmem %s0, %s467
        %p469 = pneg %p64
        %p470 = pneg %p61
        %p471 = scmp.lt.s32.totalorder %s33, 1
        %s472 = scalar_select %p471, %s33, 1
        %s473 = smul.addr %s472, 2
        %s474 = smul.addr %s473, 8
        %s475 = scalar_lea.vmem %s1, %s474
        %p476 = pneg %p90
        %p477 = pneg %p87
        %p478 = pneg %p111
        %p479 = pneg %p108
        %p480 = pneg %p132
        %p481 = pneg %p129
        %p482 = pneg %p153
        %p483 = pneg %p150
        %p484 = pneg %p174
        %p485 = pneg %p171
        %p486 = pneg %p195
        %p487 = pneg %p192
        %p488 = pneg %p216
        %p489 = pneg %p213
        %p490 = pneg %p237
        %p491 = pneg %p234
        %p492 = pneg %p258
        %p493 = pneg %p255
        %p494 = pneg %p279
        %p495 = pneg %p276
        %p496 = pneg %p300
        %p497 = pneg %p297
        %p498 = pneg %p321
        %p499 = pneg %p318
        %p500 = pneg %p342
        %p501 = pneg %p339
        %p502 = pneg %p370
        %p503 = pneg %p367
        %s504 = sand.u32 %s357, 1
        %s505 = scalar_lea.sflag [#allocation4], %s504
        %s506 = sand.u32 %s357, 1
        %s507 = smul.addr %s506, 8
        %s508 = scalar_lea.vmem [#allocation5], %s507
        %p509 = scmp.lt.s32.totalorder %s33, 1
        %s510 = scalar_select %p509, %s33, 1
        %p511 = scmp.lt.s32.totalorder %s34, 0
        %s512 = scalar_select %p511, %s34, 0
        %s513 = sadd.s32 %s512, %s510
        %s514 = smul.addr %s513, 8
        %s515 = scalar_lea.vmem %s0, %s514
        %p516 = scmp.lt.s32.totalorder %s33, 1
        %s517 = scalar_select %p516, %s33, 1
        %s518 = smul.addr %s517, 2
        %s519 = smul.addr %s518, 8
        %s520 = scalar_lea.vmem %s1, %s519
        %v522 = vld [vmem:[%s515] sm:$0xff]
        %v523 = vld [vmem:[%s520] sm:$0xff]
        %v524 = vld [vmem:[%s520 + $0x8] sm:$0xf]
        %v525 = vpack.c.bf16 %v522, %v522
        %v526 = vpack.c.bf16 %v524, %v523
        %v527 = vld [vmem:[%s2] sm:$0xf]
        %v528 = vld [vmem:[%s2 + $0x4] sm:$0xf]
        %v529 = vld [vmem:[%s2 + $0x8] sm:$0xf]
        %v530 = vld [vmem:[%s2 + $0xc] sm:$0xf]
        %v531 = vld [vmem:[%s3] sm:$0x1]
        %v533 = vlaneseq
        %v534 = vshrl.u32 %v533, 7
        %v535 = vsub.s32 0, %v534
        %v536 = vrot.slane %v531, %v535
        %v542 = vunpack.c.l.b16 %v527
        %v543 = vunpack.c.l.b16 %v528
        %v544 = vunpack.c.l.b16 %v529
        %v545 = vunpack.c.l.b16 %v530
        %v546 = vpack.c.b16 %v543, %v542
        %v547 = vpack.c.b16 %v545, %v544
        %vm550 = vcmask 261120
        %v552 = vsel %vm550, %v525, 0
        %554 = vmatprep.subr.bf16.mxu0 0
        %555 = vmatpush1.bf16.msra.mxu0 %v546
        %556 = vmatprep.subr.bf16.mxu0 0
        %557 = vmatpush1.bf16.msra.mxu0 %v547
        %558 = vmatprep.subr.bf16.mxu0 0
        %559 = vmatpush1.bf16.msra.mxu0 0
        %560 = vmatprep.subr.bf16.mxu0 0
        %561 = vmatpush1.bf16.msra.mxu0 0
        %562 = vmatprep.subr.bf16.mxu0 0
        %563 = vmatpush1.bf16.msra.mxu0 0
        %564 = vmatprep.subr.bf16.mxu0 0
        %565 = vmatpush1.bf16.msra.mxu0 0
        %566 = vmatprep.subr.bf16.mxu0 0
        %567 = vmatpush1.bf16.msra.mxu0 0
        %568 = vmatprep.subr.bf16.mxu0 0
        %569 = vmatpush1.bf16.msra.mxu0 0
        %570 = vmatprep.subr.bf16.mxu0 0
        %571 = vmatpush1.bf16.msra.mxu0 0
        %572 = vmatprep.subr.bf16.mxu0 0
        %573 = vmatpush1.bf16.msra.mxu0 0
        %574 = vmatprep.subr.bf16.mxu0 0
        %575 = vmatpush1.bf16.msra.mxu0 0
        %576 = vmatprep.subr.bf16.mxu0 0
        %577 = vmatpush1.bf16.msra.mxu0 0
        %578 = vmatprep.subr.bf16.mxu0 0
        %579 = vmatpush1.bf16.msra.mxu0 0
        %580 = vmatprep.subr.bf16.mxu0 0
        %581 = vmatpush1.bf16.msra.mxu0 0
        %582 = vmatprep.subr.bf16.mxu0 0
        %583 = vmatpush1.bf16.msra.mxu0 0
        %584 = vmatprep.subr.bf16.mxu0 0
        %585 = vmatpush1.bf16.msra.mxu0 0
        %586 = vmatprep.mubr.bf16.mxu0 0
        %587 = vmatmul.mubr.bf16.gmra.mrb[0].mxu0 %v552
        %v588 = vpop.f32.mrb[0].mxu0
        %v589 = vadd.f32 %v536, %v588
        %v590 = vpop.f32.mrb[0].mxu0
        %v591 = vpop.f32.mrb[0].mxu0
        %v592 = vpop.f32.mrb[0].mxu0
        %593 = vdwg.mxu0
        %v594 = vmul.f32 %v589, 0.35355338
        %v595 = vld [vmem:[%s4] sm:$0xf]
        %v596 = vld [vmem:[%s4 + $0x4] sm:$0xf]
        %v597 = vld [vmem:[%s4 + $0x8] sm:$0xf]
        %v598 = vld [vmem:[%s4 + $0xc] sm:$0xf]
        %v599 = vld [vmem:[%s5] sm:$0x1]
        %v601 = vlaneseq
        %v602 = vshrl.u32 %v601, 7
        %v603 = vsub.s32 0, %v602
        %v604 = vrot.slane %v599, %v603
        %v610 = vunpack.c.l.b16 %v595
        %v611 = vunpack.c.l.b16 %v596
        %v612 = vunpack.c.l.b16 %v597
        %v613 = vunpack.c.l.b16 %v598
        %v614 = vpack.c.b16 %v611, %v610
        %v615 = vpack.c.b16 %v613, %v612
        %v619 = vsel %vm550, %v526, 0
        %621 = vmatprep.subr.bf16.mxu0 0
        %622 = vmatpush1.bf16.msra.mxu0 %v614
        %623 = vmatprep.subr.bf16.mxu0 0
        %624 = vmatpush1.bf16.msra.mxu0 %v615
        %625 = vmatprep.subr.bf16.mxu0 0
        %626 = vmatpush1.bf16.msra.mxu0 0
        %627 = vmatprep.subr.bf16.mxu0 0
        %628 = vmatpush1.bf16.msra.mxu0 0
        %629 = vmatprep.subr.bf16.mxu0 0
        %630 = vmatpush1.bf16.msra.mxu0 0
        %631 = vmatprep.subr.bf16.mxu0 0
        %632 = vmatpush1.bf16.msra.mxu0 0
        %633 = vmatprep.subr.bf16.mxu0 0
        %634 = vmatpush1.bf16.msra.mxu0 0
        %635 = vmatprep.subr.bf16.mxu0 0
        %636 = vmatpush1.bf16.msra.mxu0 0
        %637 = vmatprep.subr.bf16.mxu0 0
        %638 = vmatpush1.bf16.msra.mxu0 0
        %639 = vmatprep.subr.bf16.mxu0 0
        %640 = vmatpush1.bf16.msra.mxu0 0
        %641 = vmatprep.subr.bf16.mxu0 0
        %642 = vmatpush1.bf16.msra.mxu0 0
        %643 = vmatprep.subr.bf16.mxu0 0
        %644 = vmatpush1.bf16.msra.mxu0 0
        %645 = vmatprep.subr.bf16.mxu0 0
        %646 = vmatpush1.bf16.msra.mxu0 0
        %647 = vmatprep.subr.bf16.mxu0 0
        %648 = vmatpush1.bf16.msra.mxu0 0
        %649 = vmatprep.subr.bf16.mxu0 0
        %650 = vmatpush1.bf16.msra.mxu0 0
        %651 = vmatprep.subr.bf16.mxu0 0
        %652 = vmatpush1.bf16.msra.mxu0 0
        %653 = vmatprep.mubr.bf16.mxu0 0
        %654 = vmatmul.mubr.bf16.gmra.mrb[0].mxu0 %v619
        %v655 = vpop.f32.mrb[0].mxu0
        %v656 = vadd.f32 %v604, %v655
        %v657 = vpop.f32.mrb[0].mxu0
        %v658 = vpop.f32.mrb[0].mxu0
        %v659 = vadd.f32 %v604, %v658
        %v660 = vpop.f32.mrb[0].mxu0
        %661 = vdwg.mxu0
        %v662 = vld [vmem:[%s6] sm:$0xf]
        %v663 = vld [vmem:[%s6 + $0x4] sm:$0xf]
        %v664 = vld [vmem:[%s6 + $0x8] sm:$0xf]
        %v665 = vld [vmem:[%s6 + $0xc] sm:$0xf]
        %v666 = vld [vmem:[#allocation2] sm:$0x1]
        %v668 = vlaneseq
        %v669 = vshrl.u32 %v668, 7
        %v670 = vsub.s32 0, %v669
        %v671 = vrot.slane %v666, %v670
        %v677 = vunpack.c.l.b16 %v662
        %v678 = vunpack.c.l.b16 %v663
        %v679 = vunpack.c.l.b16 %v664
        %v680 = vunpack.c.l.b16 %v665
        %v681 = vpack.c.b16 %v678, %v677
        %v682 = vpack.c.b16 %v680, %v679
        %685 = vmatprep.subr.bf16.mxu0 0
        %686 = vmatpush1.bf16.msra.mxu0 %v681
        %687 = vmatprep.subr.bf16.mxu0 0
        %688 = vmatpush1.bf16.msra.mxu0 %v682
        %689 = vmatprep.subr.bf16.mxu0 0
        %690 = vmatpush1.bf16.msra.mxu0 0
        %691 = vmatprep.subr.bf16.mxu0 0
        %692 = vmatpush1.bf16.msra.mxu0 0
        %693 = vmatprep.subr.bf16.mxu0 0
        %694 = vmatpush1.bf16.msra.mxu0 0
        %695 = vmatprep.subr.bf16.mxu0 0
        %696 = vmatpush1.bf16.msra.mxu0 0
        %697 = vmatprep.subr.bf16.mxu0 0
        %698 = vmatpush1.bf16.msra.mxu0 0
        %699 = vmatprep.subr.bf16.mxu0 0
        %700 = vmatpush1.bf16.msra.mxu0 0
        %701 = vmatprep.subr.bf16.mxu0 0
        %702 = vmatpush1.bf16.msra.mxu0 0
        %703 = vmatprep.subr.bf16.mxu0 0
        %704 = vmatpush1.bf16.msra.mxu0 0
        %705 = vmatprep.subr.bf16.mxu0 0
        %706 = vmatpush1.bf16.msra.mxu0 0
        %707 = vmatprep.subr.bf16.mxu0 0
        %708 = vmatpush1.bf16.msra.mxu0 0
        %709 = vmatprep.subr.bf16.mxu0 0
        %710 = vmatpush1.bf16.msra.mxu0 0
        %711 = vmatprep.subr.bf16.mxu0 0
        %712 = vmatpush1.bf16.msra.mxu0 0
        %713 = vmatprep.subr.bf16.mxu0 0
        %714 = vmatpush1.bf16.msra.mxu0 0
        %715 = vmatprep.subr.bf16.mxu0 0
        %716 = vmatpush1.bf16.msra.mxu0 0
        %717 = vmatprep.mubr.bf16.mxu0 0
        %718 = vmatmul.mubr.bf16.gmra.mrb[0].mxu0 %v619
        %v719 = vpop.f32.mrb[0].mxu0
        %v720 = vadd.f32 %v671, %v719
        %v721 = vpop.f32.mrb[0].mxu0
        %v722 = vpop.f32.mrb[0].mxu0
        %v723 = vadd.f32 %v671, %v722
        %v724 = vpop.f32.mrb[0].mxu0
        %725 = vdwg.mxu0
        %v726 = vpack.c.bf16 %v594, %v594
        %v727 = vpack.c.bf16 %v659, %v656
        %v728 = vpack.c.bf16 %v723, %v720
        %vm729 = vcmask 64512
        %v731 = vsel %vm729, %v726, 0
        %v734 = vsel %vm729, %v727, 0
        %736 = vmatprep.subr.bf16.mxu0 0
        %737 = vmatpush1.bf16.xpose.msra.mxu0 %v734
        %738 = vmatprep.subr.bf16.mxu0 0
        %739 = vmatpush1.bf16.xpose.msra.mxu0 0
        %740 = vmatprep.subr.bf16.mxu0 0
        %741 = vmatpush1.bf16.xpose.msra.mxu0 0
        %742 = vmatprep.subr.bf16.mxu0 0
        %743 = vmatpush1.bf16.xpose.msra.mxu0 0
        %744 = vmatprep.subr.bf16.mxu0 0
        %745 = vmatpush1.bf16.xpose.msra.mxu0 0
        %746 = vmatprep.subr.bf16.mxu0 0
        %747 = vmatpush1.bf16.xpose.msra.mxu0 0
        %748 = vmatprep.subr.bf16.mxu0 0
        %749 = vmatpush1.bf16.xpose.msra.mxu0 0
        %750 = vmatprep.subr.bf16.mxu0 0
        %751 = vmatpush1.bf16.xpose.msra.mxu0 0
        %752 = vmatprep.subr.bf16.mxu0 0
        %753 = vmatpush1.bf16.xpose.msra.mxu0 0
        %754 = vmatprep.subr.bf16.mxu0 0
        %755 = vmatpush1.bf16.xpose.msra.mxu0 0
        %756 = vmatprep.subr.bf16.mxu0 0
        %757 = vmatpush1.bf16.xpose.msra.mxu0 0
        %758 = vmatprep.subr.bf16.mxu0 0
        %759 = vmatpush1.bf16.xpose.msra.mxu0 0
        %760 = vmatprep.subr.bf16.mxu0 0
        %761 = vmatpush1.bf16.xpose.msra.mxu0 0
        %762 = vmatprep.subr.bf16.mxu0 0
        %763 = vmatpush1.bf16.xpose.msra.mxu0 0
        %764 = vmatprep.subr.bf16.mxu0 0
        %765 = vmatpush1.bf16.xpose.msra.mxu0 0
        %766 = vmatprep.subr.bf16.mxu0 0
        %767 = vmatpush1.bf16.xpose.msra.mxu0 0
        %768 = vmatprep.mubr.bf16.mxu0 0
        %769 = vmatmul.mubr.bf16.gmra.mrb[0].mxu0 %v731
        %v770 = vpop.f32.mrb[0].mxu0
        %v771 = vadd.f32 0.0, %v770
        %v772 = vpop.f32.mrb[0].mxu0
        %v773 = vpop.f32.mrb[0].mxu0
        %v774 = vpop.f32.mrb[0].mxu0
        %775 = vdwg.mxu0
        %vm776 = vcmask 97280
        %v777 = vsel %vm776, %v771, -inf
        %778 = vmax.xlane.f32.xlu0 %v777
        %v779 = vpop.xlane.xlu0 %778
        %v780 = vsub.f32 %v771, %v779
        %v781 = vmul.f32 %v780, 1.442695
        %v782 = vpow.pop %v781
        %v783 = vsel %vm776, %v782, 0.0
        %784 = vadd.xlane.f32.xlu0 %v783
        %v785 = vpop.xlane.xlu0 %784
        %v786 = vrcp.pop %v785
        %v787 = vmul.f32 %v782, %v786
        %v788 = vpack.c.bf16 %v787, %v787
        %v790 = vsel %vm776, %v788, 0
        %vm792 = vcmask 1045504
        %v794 = vsel %vm792, %v728, 0
        %796 = vmatprep.subr.bf16.mxu0 0
        %797 = vmatpush1.bf16.msra.mxu0 %v794
        %798 = vmatprep.subr.bf16.mxu0 0
        %799 = vmatpush1.bf16.msra.mxu0 0
        %800 = vmatprep.subr.bf16.mxu0 0
        %801 = vmatpush1.bf16.msra.mxu0 0
        %802 = vmatprep.subr.bf16.mxu0 0
        %803 = vmatpush1.bf16.msra.mxu0 0
        %804 = vmatprep.subr.bf16.mxu0 0
        %805 = vmatpush1.bf16.msra.mxu0 0
        %806 = vmatprep.subr.bf16.mxu0 0
        %807 = vmatpush1.bf16.msra.mxu0 0
        %808 = vmatprep.subr.bf16.mxu0 0
        %809 = vmatpush1.bf16.msra.mxu0 0
        %810 = vmatprep.subr.bf16.mxu0 0
        %811 = vmatpush1.bf16.msra.mxu0 0
        %812 = vmatprep.subr.bf16.mxu0 0
        %813 = vmatpush1.bf16.msra.mxu0 0
        %814 = vmatprep.subr.bf16.mxu0 0
        %815 = vmatpush1.bf16.msra.mxu0 0
        %816 = vmatprep.subr.bf16.mxu0 0
        %817 = vmatpush1.bf16.msra.mxu0 0
        %818 = vmatprep.subr.bf16.mxu0 0
        %819 = vmatpush1.bf16.msra.mxu0 0
        %820 = vmatprep.subr.bf16.mxu0 0
        %821 = vmatpush1.bf16.msra.mxu0 0
        %822 = vmatprep.subr.bf16.mxu0 0
        %823 = vmatpush1.bf16.msra.mxu0 0
        %824 = vmatprep.subr.bf16.mxu0 0
        %825 = vmatpush1.bf16.msra.mxu0 0
        %826 = vmatprep.subr.bf16.mxu0 0
        %827 = vmatpush1.bf16.msra.mxu0 0
        %828 = vmatprep.mubr.bf16.mxu0 0
        %829 = vmatmul.mubr.bf16.gmra.mrb[0].mxu0 %v790
        %v830 = vpop.f32.mrb[0].mxu0
        %v831 = vadd.f32 0.0, %v830
        %v832 = vpop.f32.mrb[0].mxu0
        %v833 = vpop.f32.mrb[0].mxu0
        %v834 = vpop.f32.mrb[0].mxu0
        %835 = vdwg.mxu0
        %837 = vrot.lane.b32.xlu0 %v726, 120
        %v838 = vpop.permute.xlu0 %837
        %840 = vrot.lane.b32.xlu0 %v727, 120
        %v841 = vpop.permute.xlu0 %840
        %v843 = vsel %vm729, %v838, 0
        %v846 = vsel %vm729, %v841, 0
        %848 = vmatprep.subr.bf16.mxu0 0
        %849 = vmatpush1.bf16.xpose.msra.mxu0 %v846
        %850 = vmatprep.subr.bf16.mxu0 0
        %851 = vmatpush1.bf16.xpose.msra.mxu0 0
        %852 = vmatprep.subr.bf16.mxu0 0
        %853 = vmatpush1.bf16.xpose.msra.mxu0 0
        %854 = vmatprep.subr.bf16.mxu0 0
        %855 = vmatpush1.bf16.xpose.msra.mxu0 0
        %856 = vmatprep.subr.bf16.mxu0 0
        %857 = vmatpush1.bf16.xpose.msra.mxu0 0
        %858 = vmatprep.subr.bf16.mxu0 0
        %859 = vmatpush1.bf16.xpose.msra.mxu0 0
        %860 = vmatprep.subr.bf16.mxu0 0
        %861 = vmatpush1.bf16.xpose.msra.mxu0 0
        %862 = vmatprep.subr.bf16.mxu0 0
        %863 = vmatpush1.bf16.xpose.msra.mxu0 0
        %864 = vmatprep.subr.bf16.mxu0 0
        %865 = vmatpush1.bf16.xpose.msra.mxu0 0
        %866 = vmatprep.subr.bf16.mxu0 0
        %867 = vmatpush1.bf16.xpose.msra.mxu0 0
        %868 = vmatprep.subr.bf16.mxu0 0
        %869 = vmatpush1.bf16.xpose.msra.mxu0 0
        %870 = vmatprep.subr.bf16.mxu0 0
        %871 = vmatpush1.bf16.xpose.msra.mxu0 0
        %872 = vmatprep.subr.bf16.mxu0 0
        %873 = vmatpush1.bf16.xpose.msra.mxu0 0
        %874 = vmatprep.subr.bf16.mxu0 0
        %875 = vmatpush1.bf16.xpose.msra.mxu0 0
        %876 = vmatprep.subr.bf16.mxu0 0
        %877 = vmatpush1.bf16.xpose.msra.mxu0 0
        %878 = vmatprep.subr.bf16.mxu0 0
        %879 = vmatpush1.bf16.xpose.msra.mxu0 0
        %880 = vmatprep.mubr.bf16.mxu0 0
        %881 = vmatmul.mubr.bf16.gmra.mrb[0].mxu0 %v843
        %v882 = vpop.f32.mrb[0].mxu0
        %v883 = vadd.f32 0.0, %v882
        %v884 = vpop.f32.mrb[0].mxu0
        %v885 = vpop.f32.mrb[0].mxu0
        %v886 = vpop.f32.mrb[0].mxu0
        %887 = vdwg.mxu0
        %v888 = vsel %vm776, %v883, -inf
        %889 = vmax.xlane.f32.xlu0 %v888
        %v890 = vpop.xlane.xlu0 %889
        %v891 = vsub.f32 %v883, %v890
        %v892 = vmul.f32 %v891, 1.442695
        %v893 = vpow.pop %v892
        %v894 = vsel %vm776, %v893, 0.0
        %895 = vadd.xlane.f32.xlu0 %v894
        %v896 = vpop.xlane.xlu0 %895
        %v897 = vrcp.pop %v896
        %v898 = vmul.f32 %v893, %v897
        %v899 = vpack.c.bf16 %v898, %v898
        %901 = vrot.lane.b32.xlu0 %v728, 120
        %v902 = vpop.permute.xlu0 %901
        %v904 = vsel %vm776, %v899, 0
        %v907 = vsel %vm792, %v902, 0
        %909 = vmatprep.subr.bf16.mxu0 0
        %910 = vmatpush1.bf16.msra.mxu0 %v907
        %911 = vmatprep.subr.bf16.mxu0 0
        %912 = vmatpush1.bf16.msra.mxu0 0
        %913 = vmatprep.subr.bf16.mxu0 0
        %914 = vmatpush1.bf16.msra.mxu0 0
        %915 = vmatprep.subr.bf16.mxu0 0
        %916 = vmatpush1.bf16.msra.mxu0 0
        %917 = vmatprep.subr.bf16.mxu0 0
        %918 = vmatpush1.bf16.msra.mxu0 0
        %919 = vmatprep.subr.bf16.mxu0 0
        %920 = vmatpush1.bf16.msra.mxu0 0
        %921 = vmatprep.subr.bf16.mxu0 0
        %922 = vmatpush1.bf16.msra.mxu0 0
        %923 = vmatprep.subr.bf16.mxu0 0
        %924 = vmatpush1.bf16.msra.mxu0 0
        %925 = vmatprep.subr.bf16.mxu0 0
        %926 = vmatpush1.bf16.msra.mxu0 0
        %927 = vmatprep.subr.bf16.mxu0 0
        %928 = vmatpush1.bf16.msra.mxu0 0
        %929 = vmatprep.subr.bf16.mxu0 0
        %930 = vmatpush1.bf16.msra.mxu0 0
        %931 = vmatprep.subr.bf16.mxu0 0
        %932 = vmatpush1.bf16.msra.mxu0 0
        %933 = vmatprep.subr.bf16.mxu0 0
        %934 = vmatpush1.bf16.msra.mxu0 0
        %935 = vmatprep.subr.bf16.mxu0 0
        %936 = vmatpush1.bf16.msra.mxu0 0
        %937 = vmatprep.subr.bf16.mxu0 0
        %938 = vmatpush1.bf16.msra.mxu0 0
        %939 = vmatprep.subr.bf16.mxu0 0
        %940 = vmatpush1.bf16.msra.mxu0 0
        %941 = vmatprep.mubr.bf16.mxu0 0
        %942 = vmatmul.mubr.bf16.gmra.mrb[0].mxu0 %v904
        %v943 = vpop.f32.mrb[0].mxu0
        %v944 = vadd.f32 0.0, %v943
        %v945 = vpop.f32.mrb[0].mxu0
        %v946 = vpop.f32.mrb[0].mxu0
        %v947 = vpop.f32.mrb[0].mxu0
        %948 = vdwg.mxu0
        %949 = vrot.lane.b32.xlu0 %v726, 112
        %v950 = vpop.permute.xlu0 %949
        %951 = vrot.lane.b32.xlu0 %v727, 112
        %v952 = vpop.permute.xlu0 %951
        %v954 = vsel %vm729, %v950, 0
        %v957 = vsel %vm729, %v952, 0
        %959 = vmatprep.subr.bf16.mxu0 0
        %960 = vmatpush1.bf16.xpose.msra.mxu0 %v957
        %961 = vmatprep.subr.bf16.mxu0 0
        %962 = vmatpush1.bf16.xpose.msra.mxu0 0
        %963 = vmatprep.subr.bf16.mxu0 0
        %964 = vmatpush1.bf16.xpose.msra.mxu0 0
        %965 = vmatprep.subr.bf16.mxu0 0
        %966 = vmatpush1.bf16.xpose.msra.mxu0 0
        %967 = vmatprep.subr.bf16.mxu0 0
        %968 = vmatpush1.bf16.xpose.msra.mxu0 0
        %969 = vmatprep.subr.bf16.mxu0 0
        %970 = vmatpush1.bf16.xpose.msra.mxu0 0
        %971 = vmatprep.subr.bf16.mxu0 0
        %972 = vmatpush1.bf16.xpose.msra.mxu0 0
        %973 = vmatprep.subr.bf16.mxu0 0
        %974 = vmatpush1.bf16.xpose.msra.mxu0 0
        %975 = vmatprep.subr.bf16.mxu0 0
        %976 = vmatpush1.bf16.xpose.msra.mxu0 0
        %977 = vmatprep.subr.bf16.mxu0 0
        %978 = vmatpush1.bf16.xpose.msra.mxu0 0
        %979 = vmatprep.subr.bf16.mxu0 0
        %980 = vmatpush1.bf16.xpose.msra.mxu0 0
        %981 = vmatprep.subr.bf16.mxu0 0
        %982 = vmatpush1.bf16.xpose.msra.mxu0 0
        %983 = vmatprep.subr.bf16.mxu0 0
        %984 = vmatpush1.bf16.xpose.msra.mxu0 0
        %985 = vmatprep.subr.bf16.mxu0 0
        %986 = vmatpush1.bf16.xpose.msra.mxu0 0
        %987 = vmatprep.subr.bf16.mxu0 0
        %988 = vmatpush1.bf16.xpose.msra.mxu0 0
        %989 = vmatprep.subr.bf16.mxu0 0
        %990 = vmatpush1.bf16.xpose.msra.mxu0 0
        %991 = vmatprep.mubr.bf16.mxu0 0
        %992 = vmatmul.mubr.bf16.gmra.mrb[0].mxu0 %v954
        %v993 = vpop.f32.mrb[0].mxu0
        %v994 = vadd.f32 0.0, %v993
        %v995 = vpop.f32.mrb[0].mxu0
        %v996 = vpop.f32.mrb[0].mxu0
        %v997 = vpop.f32.mrb[0].mxu0
        %998 = vdwg.mxu0
        %v999 = vsel %vm776, %v994, -inf
        %1000 = vmax.xlane.f32.xlu0 %v999
        %v1001 = vpop.xlane.xlu0 %1000
        %v1002 = vsub.f32 %v994, %v1001
        %v1003 = vmul.f32 %v1002, 1.442695
        %v1004 = vpow.pop %v1003
        %v1005 = vsel %vm776, %v1004, 0.0
        %1006 = vadd.xlane.f32.xlu0 %v1005
        %v1007 = vpop.xlane.xlu0 %1006
        %v1008 = vrcp.pop %v1007
        %v1009 = vmul.f32 %v1004, %v1008
        %v1010 = vpack.c.bf16 %v1009, %v1009
        %1011 = vrot.lane.b32.xlu0 %v728, 112
        %v1012 = vpop.permute.xlu0 %1011
        %v1014 = vsel %vm776, %v1010, 0
        %v1017 = vsel %vm792, %v1012, 0
        %1019 = vmatprep.subr.bf16.mxu0 0
        %1020 = vmatpush1.bf16.msra.mxu0 %v1017
        %1021 = vmatprep.subr.bf16.mxu0 0
        %1022 = vmatpush1.bf16.msra.mxu0 0
        %1023 = vmatprep.subr.bf16.mxu0 0
        %1024 = vmatpush1.bf16.msra.mxu0 0
        %1025 = vmatprep.subr.bf16.mxu0 0
        %1026 = vmatpush1.bf16.msra.mxu0 0
        %1027 = vmatprep.subr.bf16.mxu0 0
        %1028 = vmatpush1.bf16.msra.mxu0 0
        %1029 = vmatprep.subr.bf16.mxu0 0
        %1030 = vmatpush1.bf16.msra.mxu0 0
        %1031 = vmatprep.subr.bf16.mxu0 0
        %1032 = vmatpush1.bf16.msra.mxu0 0
        %1033 = vmatprep.subr.bf16.mxu0 0
        %1034 = vmatpush1.bf16.msra.mxu0 0
        %1035 = vmatprep.subr.bf16.mxu0 0
        %1036 = vmatpush1.bf16.msra.mxu0 0
        %1037 = vmatprep.subr.bf16.mxu0 0
        %1038 = vmatpush1.bf16.msra.mxu0 0
        %1039 = vmatprep.subr.bf16.mxu0 0
        %1040 = vmatpush1.bf16.msra.mxu0 0
        %1041 = vmatprep.subr.bf16.mxu0 0
        %1042 = vmatpush1.bf16.msra.mxu0 0
        %1043 = vmatprep.subr.bf16.mxu0 0
        %1044 = vmatpush1.bf16.msra.mxu0 0
        %1045 = vmatprep.subr.bf16.mxu0 0
        %1046 = vmatpush1.bf16.msra.mxu0 0
        %1047 = vmatprep.subr.bf16.mxu0 0
        %1048 = vmatpush1.bf16.msra.mxu0 0
        %1049 = vmatprep.subr.bf16.mxu0 0
        %1050 = vmatpush1.bf16.msra.mxu0 0
        %1051 = vmatprep.mubr.bf16.mxu0 0
        %1052 = vmatmul.mubr.bf16.gmra.mrb[0].mxu0 %v1014
        %v1053 = vpop.f32.mrb[0].mxu0
        %v1054 = vadd.f32 0.0, %v1053
        %v1055 = vpop.f32.mrb[0].mxu0
        %v1056 = vpop.f32.mrb[0].mxu0
        %v1057 = vpop.f32.mrb[0].mxu0
        %1058 = vdwg.mxu0
        %1059 = vrot.lane.b32.xlu0 %v726, 104
        %v1060 = vpop.permute.xlu0 %1059
        %1061 = vrot.lane.b32.xlu0 %v727, 104
        %v1062 = vpop.permute.xlu0 %1061
        %v1064 = vsel %vm729, %v1060, 0
        %v1067 = vsel %vm729, %v1062, 0
        %1069 = vmatprep.subr.bf16.mxu0 0
        %1070 = vmatpush1.bf16.xpose.msra.mxu0 %v1067
        %1071 = vmatprep.subr.bf16.mxu0 0
        %1072 = vmatpush1.bf16.xpose.msra.mxu0 0
        %1073 = vmatprep.subr.bf16.mxu0 0
        %1074 = vmatpush1.bf16.xpose.msra.mxu0 0
        %1075 = vmatprep.subr.bf16.mxu0 0
        %1076 = vmatpush1.bf16.xpose.msra.mxu0 0
        %1077 = vmatprep.subr.bf16.mxu0 0
        %1078 = vmatpush1.bf16.xpose.msra.mxu0 0
        %1079 = vmatprep.subr.bf16.mxu0 0
        %1080 = vmatpush1.bf16.xpose.msra.mxu0 0
        %1081 = vmatprep.subr.bf16.mxu0 0
        %1082 = vmatpush1.bf16.xpose.msra.mxu0 0
        %1083 = vmatprep.subr.bf16.mxu0 0
        %1084 = vmatpush1.bf16.xpose.msra.mxu0 0
        %1085 = vmatprep.subr.bf16.mxu0 0
        %1086 = vmatpush1.bf16.xpose.msra.mxu0 0
        %1087 = vmatprep.subr.bf16.mxu0 0
        %1088 = vmatpush1.bf16.xpose.msra.mxu0 0
        %1089 = vmatprep.subr.bf16.mxu0 0
        %1090 = vmatpush1.bf16.xpose.msra.mxu0 0
        %1091 = vmatprep.subr.bf16.mxu0 0
        %1092 = vmatpush1.bf16.xpose.msra.mxu0 0
        %1093 = vmatprep.subr.bf16.mxu0 0
        %1094 = vmatpush1.bf16.xpose.msra.mxu0 0
        %1095 = vmatprep.subr.bf16.mxu0 0
        %1096 = vmatpush1.bf16.xpose.msra.mxu0 0
        %1097 = vmatprep.subr.bf16.mxu0 0
        %1098 = vmatpush1.bf16.xpose.msra.mxu0 0
        %1099 = vmatprep.subr.bf16.mxu0 0
        %1100 = vmatpush1.bf16.xpose.msra.mxu0 0
        %1101 = vmatprep.mubr.bf16.mxu0 0
        %1102 = vmatmul.mubr.bf16.gmra.mrb[0].mxu0 %v1064
        %v1103 = vpop.f32.mrb[0].mxu0
        %v1104 = vadd.f32 0.0, %v1103
        %v1105 = vpop.f32.mrb[0].mxu0
        %v1106 = vpop.f32.mrb[0].mxu0
        %v1107 = vpop.f32.mrb[0].mxu0
        %1108 = vdwg.mxu0
        %v1109 = vsel %vm776, %v1104, -inf
        %1110 = vmax.xlane.f32.xlu0 %v1109
        %v1111 = vpop.xlane.xlu0 %1110
        %v1112 = vsub.f32 %v1104, %v1111
        %v1113 = vmul.f32 %v1112, 1.442695
        %v1114 = vpow.pop %v1113
        %v1115 = vsel %vm776, %v1114, 0.0
        %1116 = vadd.xlane.f32.xlu0 %v1115
        %v1117 = vpop.xlane.xlu0 %1116
        %v1118 = vrcp.pop %v1117
        %v1119 = vmul.f32 %v1114, %v1118
        %v1120 = vpack.c.bf16 %v1119, %v1119
        %1121 = vrot.lane.b32.xlu0 %v728, 104
        %v1122 = vpop.permute.xlu0 %1121
        %v1124 = vsel %vm776, %v1120, 0
        %v1127 = vsel %vm792, %v1122, 0
        %1129 = vmatprep.subr.bf16.mxu0 0
        %1130 = vmatpush1.bf16.msra.mxu0 %v1127
        %1131 = vmatprep.subr.bf16.mxu0 0
        %1132 = vmatpush1.bf16.msra.mxu0 0
        %1133 = vmatprep.subr.bf16.mxu0 0
        %1134 = vmatpush1.bf16.msra.mxu0 0
        %1135 = vmatprep.subr.bf16.mxu0 0
        %1136 = vmatpush1.bf16.msra.mxu0 0
        %1137 = vmatprep.subr.bf16.mxu0 0
        %1138 = vmatpush1.bf16.msra.mxu0 0
        %1139 = vmatprep.subr.bf16.mxu0 0
        %1140 = vmatpush1.bf16.msra.mxu0 0
        %1141 = vmatprep.subr.bf16.mxu0 0
        %1142 = vmatpush1.bf16.msra.mxu0 0
        %1143 = vmatprep.subr.bf16.mxu0 0
        %1144 = vmatpush1.bf16.msra.mxu0 0
        %1145 = vmatprep.subr.bf16.mxu0 0
        %1146 = vmatpush1.bf16.msra.mxu0 0
        %1147 = vmatprep.subr.bf16.mxu0 0
        %1148 = vmatpush1.bf16.msra.mxu0 0
        %1149 = vmatprep.subr.bf16.mxu0 0
        %1150 = vmatpush1.bf16.msra.mxu0 0
        %1151 = vmatprep.subr.bf16.mxu0 0
        %1152 = vmatpush1.bf16.msra.mxu0 0
        %1153 = vmatprep.subr.bf16.mxu0 0
        %1154 = vmatpush1.bf16.msra.mxu0 0
        %1155 = vmatprep.subr.bf16.mxu0 0
        %1156 = vmatpush1.bf16.msra.mxu0 0
        %1157 = vmatprep.subr.bf16.mxu0 0
        %1158 = vmatpush1.bf16.msra.mxu0 0
        %1159 = vmatprep.subr.bf16.mxu0 0
        %1160 = vmatpush1.bf16.msra.mxu0 0
        %1161 = vmatprep.mubr.bf16.mxu0 0
        %1162 = vmatmul.mubr.bf16.gmra.mrb[0].mxu0 %v1124
        %v1163 = vpop.f32.mrb[0].mxu0
        %v1164 = vadd.f32 0.0, %v1163
        %v1165 = vpop.f32.mrb[0].mxu0
        %v1166 = vpop.f32.mrb[0].mxu0
        %v1167 = vpop.f32.mrb[0].mxu0
        %1168 = vdwg.mxu0
        %1170 = vrot.lane.b32.xlu0 %v944, 8
        %v1171 = vpop.permute.xlu0 %1170
        %1174 = vrot.lane.b32.xlu0 %v1054, 16
        %v1175 = vpop.permute.xlu0 %1174
        %1178 = vrot.lane.b32.xlu0 %v1164, 24
        %v1179 = vpop.permute.xlu0 %1178
        %v1181 = vsel %vm729, %v831, %v1171
        %vm1182 = vcmask 130048
        %v1183 = vsel %vm1182, %v1181, %v1175
        %vm1184 = vcmask 195584
        %v1185 = vsel %vm1184, %v1183, %v1179
        %v1186 = vpack.c.bf16 %v1185, %v1185
        %v1187 = vld [vmem:[%s8] sm:$0xf]
        %v1188 = vld [vmem:[%s8 + $0x4] sm:$0xf]
        %v1189 = vld [vmem:[%s8 + $0x8] sm:$0xf]
        %v1190 = vld [vmem:[%s8 + $0xc] sm:$0xf]
        %v1191 = vld [vmem:[%s9] sm:$0x1]
        %v1193 = vlaneseq
        %v1194 = vshrl.u32 %v1193, 7
        %v1195 = vsub.s32 0, %v1194
        %v1196 = vrot.slane %v1191, %v1195
        %v1202 = vunpack.c.l.b16 %v1187
        %v1203 = vunpack.c.l.b16 %v1188
        %v1204 = vunpack.c.l.b16 %v1189
        %v1205 = vunpack.c.l.b16 %v1190
        %v1206 = vpack.c.b16 %v1203, %v1202
        %v1207 = vpack.c.b16 %v1205, %v1204
        %v1211 = vsel %vm550, %v1186, 0
        %1213 = vmatprep.subr.bf16.mxu0 0
        %1214 = vmatpush1.bf16.msra.mxu0 %v1206
        %1215 = vmatprep.subr.bf16.mxu0 0
        %1216 = vmatpush1.bf16.msra.mxu0 %v1207
        %1217 = vmatprep.subr.bf16.mxu0 0
        %1218 = vmatpush1.bf16.msra.mxu0 0
        %1219 = vmatprep.subr.bf16.mxu0 0
        %1220 = vmatpush1.bf16.msra.mxu0 0
        %1221 = vmatprep.subr.bf16.mxu0 0
        %1222 = vmatpush1.bf16.msra.mxu0 0
        %1223 = vmatprep.subr.bf16.mxu0 0
        %1224 = vmatpush1.bf16.msra.mxu0 0
        %1225 = vmatprep.subr.bf16.mxu0 0
        %1226 = vmatpush1.bf16.msra.mxu0 0
        %1227 = vmatprep.subr.bf16.mxu0 0
        %1228 = vmatpush1.bf16.msra.mxu0 0
        %1229 = vmatprep.subr.bf16.mxu0 0
        %1230 = vmatpush1.bf16.msra.mxu0 0
        %1231 = vmatprep.subr.bf16.mxu0 0
        %1232 = vmatpush1.bf16.msra.mxu0 0
        %1233 = vmatprep.subr.bf16.mxu0 0
        %1234 = vmatpush1.bf16.msra.mxu0 0
        %1235 = vmatprep.subr.bf16.mxu0 0
        %1236 = vmatpush1.bf16.msra.mxu0 0
        %1237 = vmatprep.subr.bf16.mxu0 0
        %1238 = vmatpush1.bf16.msra.mxu0 0
        %1239 = vmatprep.subr.bf16.mxu0 0
        %1240 = vmatpush1.bf16.msra.mxu0 0
        %1241 = vmatprep.subr.bf16.mxu0 0
        %1242 = vmatpush1.bf16.msra.mxu0 0
        %1243 = vmatprep.subr.bf16.mxu0 0
        %1244 = vmatpush1.bf16.msra.mxu0 0
        %1245 = vmatprep.mubr.bf16.mxu0 0
        %1246 = vmatmul.mubr.bf16.gmra.mrb[0].mxu0 %v1211
        %v1247 = vpop.f32.mrb[0].mxu0
        %v1248 = vadd.f32 %v1196, %v1247
        %v1249 = vpop.f32.mrb[0].mxu0
        %v1250 = vpop.f32.mrb[0].mxu0
        %v1251 = vpop.f32.mrb[0].mxu0
        %1252 = vdwg.mxu0
        %v1253 = vld [vmem:[%s10] sm:$0xf]
        %v1254 = vld [vmem:[%s10 + $0x4] sm:$0xf]
        %v1255 = vld [vmem:[%s10 + $0x8] sm:$0xf]
        %v1256 = vld [vmem:[%s10 + $0xc] sm:$0xf]
        %v1257 = vld [vmem:[%s10 + $0x10] sm:$0xf]
        %v1258 = vld [vmem:[%s10 + $0x14] sm:$0xf]
        %v1259 = vld [vmem:[%s10 + $0x18] sm:$0xf]
        %v1260 = vld [vmem:[%s10 + $0x1c] sm:$0xf]
        %v1261 = vpack.c.bf16 %v1248, %v1248
        %v1266 = vunpack.c.l.b16 %v1257
        %v1267 = vunpack.c.l.b16 %v1258
        %v1268 = vunpack.c.l.b16 %v1259
        %v1269 = vunpack.c.l.b16 %v1260
        %v1270 = vpack.c.b16 %v1267, %v1266
        %v1271 = vpack.c.b16 %v1269, %v1268
        %v1275 = vsel %vm550, %v1261, 0
        %1277 = vmatprep.subr.bf16.mxu0 0
        %1278 = vmatpush1.bf16.msra.mxu0 %v1270
        %1279 = vmatprep.subr.bf16.mxu0 0
        %1280 = vmatpush1.bf16.msra.mxu0 %v1271
        %1281 = vmatprep.subr.bf16.mxu0 0
        %1282 = vmatpush1.bf16.msra.mxu0 0
        %1283 = vmatprep.subr.bf16.mxu0 0
        %1284 = vmatpush1.bf16.msra.mxu0 0
        %1285 = vmatprep.subr.bf16.mxu0 0
        %1286 = vmatpush1.bf16.msra.mxu0 0
        %1287 = vmatprep.subr.bf16.mxu0 0
        %1288 = vmatpush1.bf16.msra.mxu0 0
        %1289 = vmatprep.subr.bf16.mxu0 0
        %1290 = vmatpush1.bf16.msra.mxu0 0
        %1291 = vmatprep.subr.bf16.mxu0 0
        %1292 = vmatpush1.bf16.msra.mxu0 0
        %1293 = vmatprep.subr.bf16.mxu0 0
        %1294 = vmatpush1.bf16.msra.mxu0 0
        %1295 = vmatprep.subr.bf16.mxu0 0
        %1296 = vmatpush1.bf16.msra.mxu0 0
        %1297 = vmatprep.subr.bf16.mxu0 0
        %1298 = vmatpush1.bf16.msra.mxu0 0
        %1299 = vmatprep.subr.bf16.mxu0 0
        %1300 = vmatpush1.bf16.msra.mxu0 0
        %1301 = vmatprep.subr.bf16.mxu0 0
        %1302 = vmatpush1.bf16.msra.mxu0 0
        %1303 = vmatprep.subr.bf16.mxu0 0
        %1304 = vmatpush1.bf16.msra.mxu0 0
        %1305 = vmatprep.subr.bf16.mxu0 0
        %1306 = vmatpush1.bf16.msra.mxu0 0
        %1307 = vmatprep.subr.bf16.mxu0 0
        %1308 = vmatpush1.bf16.msra.mxu0 0
        %1309 = vmatprep.mubr.bf16.mxu0 0
        %1310 = vmatmul.mubr.bf16.gmra.mrb[0].mxu0 %v1275
        %v1311 = vpop.f32.mrb[0].mxu0
        %v1312 = vadd.f32 0.0, %v1311
        %v1313 = vpop.f32.mrb[0].mxu0
        %v1314 = vpop.f32.mrb[0].mxu0
        %v1315 = vpop.f32.mrb[0].mxu0
        %1316 = vdwg.mxu0
        %v1321 = vunpack.c.l.b16 %v1253
        %v1322 = vunpack.c.l.b16 %v1254
        %v1323 = vunpack.c.l.b16 %v1255
        %v1324 = vunpack.c.l.b16 %v1256
        %v1325 = vpack.c.b16 %v1322, %v1321
        %v1326 = vpack.c.b16 %v1324, %v1323
        %1329 = vmatprep.subr.bf16.mxu0 0
        %1330 = vmatpush1.bf16.msra.mxu0 %v1325
        %1331 = vmatprep.subr.bf16.mxu0 0
        %1332 = vmatpush1.bf16.msra.mxu0 %v1326
        %1333 = vmatprep.subr.bf16.mxu0 0
        %1334 = vmatpush1.bf16.msra.mxu0 0
        %1335 = vmatprep.subr.bf16.mxu0 0
        %1336 = vmatpush1.bf16.msra.mxu0 0
        %1337 = vmatprep.subr.bf16.mxu0 0
        %1338 = vmatpush1.bf16.msra.mxu0 0
        %1339 = vmatprep.subr.bf16.mxu0 0
        %1340 = vmatpush1.bf16.msra.mxu0 0
        %1341 = vmatprep.subr.bf16.mxu0 0
        %1342 = vmatpush1.bf16.msra.mxu0 0
        %1343 = vmatprep.subr.bf16.mxu0 0
        %1344 = vmatpush1.bf16.msra.mxu0 0
        %1345 = vmatprep.subr.bf16.mxu0 0
        %1346 = vmatpush1.bf16.msra.mxu0 0
        %1347 = vmatprep.subr.bf16.mxu0 0
        %1348 = vmatpush1.bf16.msra.mxu0 0
        %1349 = vmatprep.subr.bf16.mxu0 0
        %1350 = vmatpush1.bf16.msra.mxu0 0
        %1351 = vmatprep.subr.bf16.mxu0 0
        %1352 = vmatpush1.bf16.msra.mxu0 0
        %1353 = vmatprep.subr.bf16.mxu0 0
        %1354 = vmatpush1.bf16.msra.mxu0 0
        %1355 = vmatprep.subr.bf16.mxu0 0
        %1356 = vmatpush1.bf16.msra.mxu0 0
        %1357 = vmatprep.subr.bf16.mxu0 0
        %1358 = vmatpush1.bf16.msra.mxu0 0
        %1359 = vmatprep.subr.bf16.mxu0 0
        %1360 = vmatpush1.bf16.msra.mxu0 0
        %1361 = vmatprep.mubr.bf16.mxu0 0
        %1362 = vmatmul.mubr.bf16.gmra.mrb[0].mxu0 %v552
        %v1363 = vpop.f32.mrb[0].mxu0
        %v1364 = vadd.f32 %v1312, %v1363
        %v1365 = vpop.f32.mrb[0].mxu0
        %v1366 = vpop.f32.mrb[0].mxu0
        %v1367 = vpop.f32.mrb[0].mxu0
        %1368 = vdwg.mxu0
        %v1369 = vld [vmem:[%s11] sm:$0x1]
        %v1371 = vlaneseq
        %v1372 = vshrl.u32 %v1371, 7
        %v1373 = vsub.s32 0, %v1372
        %v1374 = vrot.slane %v1369, %v1373
        %v1376 = vadd.f32 %v1364, %v1374
        %v1377 = vmax.f32 %v1376, 0.0
        %v1378 = vpack.c.bf16 %v1377, %v1377
        %v1379 = vld [vmem:[%s12] sm:$0xf]
        %v1380 = vld [vmem:[%s12 + $0x4] sm:$0xf]
        %v1381 = vld [vmem:[%s12 + $0x8] sm:$0xf]
        %v1382 = vld [vmem:[%s12 + $0xc] sm:$0xf]
        %v1383 = vld [vmem:[%s12 + $0x10] sm:$0xf]
        %v1384 = vld [vmem:[%s12 + $0x14] sm:$0xf]
        %v1385 = vld [vmem:[%s12 + $0x18] sm:$0xf]
        %v1386 = vld [vmem:[%s12 + $0x1c] sm:$0xf]
        %v1387 = vld [vmem:[%s13] sm:$0x1]
        %v1389 = vlaneseq
        %v1390 = vshrl.u32 %v1389, 7
        %v1391 = vsub.s32 0, %v1390
        %v1392 = vrot.slane %v1387, %v1391
        %v1402 = vunpack.c.l.b16 %v1379
        %v1403 = vunpack.c.l.b16 %v1380
        %v1404 = vunpack.c.l.b16 %v1381
        %v1405 = vunpack.c.l.b16 %v1382
        %v1406 = vunpack.c.l.b16 %v1383
        %v1407 = vunpack.c.l.b16 %v1384
        %v1408 = vunpack.c.l.b16 %v1385
        %v1409 = vunpack.c.l.b16 %v1386
        %v1410 = vpack.c.b16 %v1403, %v1402
        %v1411 = vpack.c.b16 %v1405, %v1404
        %v1412 = vpack.c.b16 %v1407, %v1406
        %v1413 = vpack.c.b16 %v1409, %v1408
        %vm1418 = vcmask 523264
        %v1420 = vsel %vm1418, %v1378, 0
        %1422 = vmatprep.subr.bf16.mxu0 0
        %1423 = vmatpush1.bf16.msra.mxu0 %v1410
        %1424 = vmatprep.subr.bf16.mxu0 0
        %1425 = vmatpush1.bf16.msra.mxu0 %v1411
        %1426 = vmatprep.subr.bf16.mxu0 0
        %1427 = vmatpush1.bf16.msra.mxu0 %v1412
        %1428 = vmatprep.subr.bf16.mxu0 0
        %1429 = vmatpush1.bf16.msra.mxu0 %v1413
        %1430 = vmatprep.subr.bf16.mxu0 0
        %1431 = vmatpush1.bf16.msra.mxu0 0
        %1432 = vmatprep.subr.bf16.mxu0 0
        %1433 = vmatpush1.bf16.msra.mxu0 0
        %1434 = vmatprep.subr.bf16.mxu0 0
        %1435 = vmatpush1.bf16.msra.mxu0 0
        %1436 = vmatprep.subr.bf16.mxu0 0
        %1437 = vmatpush1.bf16.msra.mxu0 0
        %1438 = vmatprep.subr.bf16.mxu0 0
        %1439 = vmatpush1.bf16.msra.mxu0 0
        %1440 = vmatprep.subr.bf16.mxu0 0
        %1441 = vmatpush1.bf16.msra.mxu0 0
        %1442 = vmatprep.subr.bf16.mxu0 0
        %1443 = vmatpush1.bf16.msra.mxu0 0
        %1444 = vmatprep.subr.bf16.mxu0 0
        %1445 = vmatpush1.bf16.msra.mxu0 0
        %1446 = vmatprep.subr.bf16.mxu0 0
        %1447 = vmatpush1.bf16.msra.mxu0 0
        %1448 = vmatprep.subr.bf16.mxu0 0
        %1449 = vmatpush1.bf16.msra.mxu0 0
        %1450 = vmatprep.subr.bf16.mxu0 0
        %1451 = vmatpush1.bf16.msra.mxu0 0
        %1452 = vmatprep.subr.bf16.mxu0 0
        %1453 = vmatpush1.bf16.msra.mxu0 0
        %1454 = vmatprep.mubr.bf16.mxu0 0
        %1455 = vmatmul.mubr.bf16.gmra.mrb[0].mxu0 %v1420
        %v1456 = vpop.f32.mrb[0].mxu0
        %v1457 = vadd.f32 %v1392, %v1456
        %v1458 = vpop.f32.mrb[0].mxu0
        %v1459 = vpop.f32.mrb[0].mxu0
        %v1460 = vpop.f32.mrb[0].mxu0
        %1461 = vdwg.mxu0
        %1462 = vst.msk [vmem:[%s508] sm:$0xff] %vm550, %v1457
        %s1463 = sand.u32 %s357, 1
        %s1464 = scalar_lea.sflag [#allocation4], %s1463
        %s1465 = sand.u32 %s357, 1
        %s1466 = smul.addr %s1465, 8
        %s1467 = scalar_lea.vmem [#allocation5], %s1466
        // Predicated region
        $region81: #{tpu_custom_call.1} parent=75 // pred_check
          %p1468 = pneg %p367
        $region82: #{tpu_custom_call.1} parent=75 // pred_check_branch
          %1470 = sbr.rel (%p1468) target = $region84
        $region83: #{tpu_custom_call.1} parent=75 // pred_region
          %s1472 = ssub.s32 128, 128
          %1473 = vsyncadd %s1464, %s1472
          %s1474 = sadd.s32 %s34, %s33
          %s1475 = smul.addr %s1474, 128
          %s1476 = scalar_lea.hbm %s14, %s1475
          %s1478 = sshll.u32 %s1467, 4
          %s1479 = int_to_ptr.vmem [resolvable:$true] %s1478
          %1481 = dma.vmem_to_hbm [thread:$0]  %s1479, 128, %s1476, %s1464
        $region84: #{tpu_custom_call.1} parent=75 // pred_fallthru
          _
      $region76: #{tpu_custom_call.1} parent=5 // pred_fallthru
        _
      %p1482 = scmp.le.s32.totalorder 2, %s24
      // Predicated region
      $region85: #{tpu_custom_call.1} parent=5 // pred_check
        %p1483 = pneg %p1482
      $region86: #{tpu_custom_call.1} parent=5 // pred_check_branch
        %1485 = sbr.rel (%p1483) target = $region88
      $region87: #{tpu_custom_call.1} parent=5 // pred_region
        %s1486 = ssub.s32 %s24, 2
        // Predicated region
        $region89: #{tpu_custom_call.1} parent=87 // pred_check
          %p1487 = pneg %p373
        $region90: #{tpu_custom_call.1} parent=87 // pred_check_branch
          %1489 = sbr.rel (%p1487) target = $region92
        $region91: #{tpu_custom_call.1} parent=87 // pred_region
          %s1490 = sand.u32 %s358, 1
          %s1491 = scalar_lea.sflag [#allocation4], %s1490
          %s1492 = sand.u32 %s358, 1
          %s1493 = smul.addr %s1492, 8
          %s1494 = scalar_lea.vmem [#allocation5], %s1493
          %1495 = dma.done %s1491, 128
        $region92: #{tpu_custom_call.1} parent=87 // pred_fallthru
          _
      $region88: #{tpu_custom_call.1} parent=5 // pred_fallthru
        _
    $region6: #{tpu_custom_call.1} parent=1 // loop_footer
      %s28 = sadd.s32 1, %s24
    $region7: #{tpu_custom_call.1} parent=1 // loop_footer_branch
      %23 = sbr.rel target = $region3
    $region8: #{tpu_custom_call.1} parent=1 // loop_exit
      _
    %1496 = vsyncpa [#allocation3], 1
    %s1497 = scalar_lea.sflag [#allocation3], 1
    %1498 = vsyncpa %s1497, 1
    %1499 = vsyncpa [#allocation4], 1
    %s1500 = scalar_lea.sflag [#allocation4], 1
    %1501 = vsyncpa %s1500, 1

</llo_original>
